<compile_context>
chip_gen: v7x
topology: tpu7x:2x2x1
jax: 0.10.0
libtpu: 0.0.40
codegen_flags: <defaults>
</compile_context>

<pallas_src>
import functools

import jax
import jax.numpy as jnp
import numpy as np
from jax import lax
from jax.experimental import pallas as pl
from jax.experimental.pallas import tpu as pltpu

EPS = 1e-5
DIL = 4          # dilation of the 3x3 convs in SpatialGate
KSIZE = 3
LANE = 128


# --------------------------- kernel body ---------------------------
def _bam_kernel(shifts,
                x_ref, mask_ref,
                wm1_ref, bm1_ref, wm2_ref, bm2_ref,
                wc1_ref, bc1_ref,
                wd1_ref, bd1_ref, wd2_ref, bd2_ref,
                wc3_ref, bc3_ref,
                o_ref, stack_ref):
    B_blk, C, HW = x_ref.shape
    CRp = wc1_ref.shape[0]
    inv_hw = jnp.float32(1.0 / HW)

    def dil_conv3x3(y, w_ref, b_ref):
        # y: (CRp, HW).  Write the 9 lane-shifted, masked taps into the
        # persistent VMEM stack (sublane-aligned: CRp % 8 == 0, static
        # offsets), then contract with the packed (CRp, 9*CRp) weight in a
        # single matmul (column index = tap*CRp + cin matches the stack).
        for t, s in enumerate(shifts):
            rolled = y if s == 0 else pltpu.roll(y, (-s) % HW, 1)
            stack_ref[pl.ds(t * CRp, CRp), :] = rolled * mask_ref[t:t + 1, :]
        return jnp.dot(w_ref[...], stack_ref[...],
                       preferred_element_type=jnp.float32) + b_ref[...]

    def body(b, carry):
        x = x_ref[b]                                            # (C, HW) f32

        # ---------------- channel gate ----------------
        # MLP cost is negligible vs. the conv matmuls / HBM traffic; it runs
        # per image on a 128-lane tile of the pooled column (no HW broadcast).
        pooled = jnp.sum(x, axis=1, keepdims=True) * inv_hw     # (C, 1)
        pooled_t = jnp.broadcast_to(pooled, (C, LANE))          # (C, 128)
        h1 = jnp.maximum(
            jnp.dot(wm1_ref[...], pooled_t,
                    preferred_element_type=jnp.float32) + bm1_ref[...], 0.0)
        ch = jnp.dot(wm2_ref[...], h1,
                     preferred_element_type=jnp.float32) + bm2_ref[...]
        channel = ch[:, 0:1]                                    # (C, 1)

        # ---------------- spatial gate (BN affines pre-folded) ----------------
        y1 = jnp.dot(wc1_ref[...], x,
                     preferred_element_type=jnp.float32) + bc1_ref[...]   # (CRp, HW)
        y2 = jnp.maximum(dil_conv3x3(y1, wd1_ref, bd1_ref), 0.0)
        y3 = jnp.maximum(dil_conv3x3(y2, wd2_ref, bd2_ref), 0.0)
        spatial = jnp.dot(wc3_ref[...], y3,
                          preferred_element_type=jnp.float32) + bc3_ref[...]  # (1, HW)

        attn = jax.nn.sigmoid(channel + spatial)                # (C, HW)
        o_ref[b] = x * (1.0 + attn)
        return carry

    lax.fori_loop(0, B_blk, body, 0)


# --------------------------- host-side helpers ---------------------------
def _tap_geometry(H, W):
    """Static shift amounts and (9, H*W) validity masks for the dilated taps."""
    HW = H * W
    hh = np.arange(HW) // W
    ww = np.arange(HW) % W
    shifts, masks = [], []
    for kh in range(KSIZE):
        for kw in range(KSIZE):
            dh = (kh - 1) * DIL
            dw = (kw - 1) * DIL
            valid = ((hh + dh >= 0) & (hh + dh < H) &
                     (ww + dw >= 0) & (ww + dw < W))
            shifts.append(dh * W + dw)
            masks.append(valid.astype(np.float32))
    return tuple(shifts), np.stack(masks)          # (9 ints), (9, HW) f32


def _pad_rows(a, rows):
    pad = rows - a.shape[0]
    return a if pad == 0 else jnp.pad(a, ((0, pad), (0, 0)))


def _pack_dil_weight(w4, CRp):
    """(CR, CR, 3, 3) OIHW -> (CRp, 9*CRp), column = tap*CRp + cin, zero pad."""
    CR = w4.shape[0]
    w = jnp.zeros((CRp, 9 * CRp), jnp.float32)
    for kh in range(KSIZE):
        for kw in range(KSIZE):
            t = kh * KSIZE + kw
            w = w.at[:CR, t * CRp:t * CRp + CR].set(w4[:, :, kh, kw])
    return w


def _device_budget():
    """(two_tensorcores, physical_vmem_bytes) with conservative fallbacks."""
    kind = ''
    try:
        kind = jax.devices()[0].device_kind.lower()
    except Exception:
        pass
    two_tc = ('v7' in kind) or ('7x' in kind)
    vmem_phys = 64 << 20                       # conservative default (v7x size)
    if (not two_tc) and (('v5' in kind) or ('v6' in kind)):
        vmem_phys = 128 << 20
    try:
        info = pltpu.get_tpu_info()
        vmem_phys = int(getattr(info, 'vmem_capacity_bytes', vmem_phys))
    except Exception:
        pass
    return two_tc, vmem_phys


# --------------------------- wrapper ---------------------------
def bam_pallas(x, p, reduction=16, block_b=None):
    B, C, H, W = x.shape
    assert C % reduction == 0, "channel must be divisible by reduction"
    CR = C // reduction
    CRp = ((CR + 7) // 8) * 8                 # sublane-padded reduced channels
    HW = H * W

    # Free reshape only: no pad, no transpose -> no extra HBM passes.
    x3 = x.reshape(B, C, HW).astype(jnp.float32)

    # ---- fold eval-mode BatchNorm affines, pad CR->CRp, repack conv weights --
    wm2f = p['wm2'] * p['cbn_s']
    bm2f = p['bm2'] * p['cbn_s'] + p['cbn_b']

    wc1p = _pad_rows(p['wc1'], CRp)
    bc1p = _pad_rows(p['bc1'], CRp)

    def fold_dil(w4, bd, scale, bias):
        wf = _pack_dil_weight(w4, CRp) * _pad_rows(scale, CRp)
        bf = _pad_rows(bd * scale + bias, CRp)
        return wf, bf

    wd1f, bd1f = fold_dil(p['wd1_4d'], p['bd1'], p['bn1_s'], p['bn1_b'])
    wd2f, bd2f = fold_dil(p['wd2_4d'], p['bd2'], p['bn2_s'], p['bn2_b'])

    wc3p = jnp.pad(p['wc3'] * p['sbn_s'], ((0, 0), (0, CRp - CR)))
    bc3f = p['bc3'] * p['sbn_s'] + p['sbn_b']

    shifts, masks_np = _tap_geometry(H, W)
    mask_arr = jnp.asarray(masks_np)                                # (9, HW)

    # ---- chip-aware VMEM budget & batch blocking ----------------------------
    two_tc, vmem_phys = _device_budget()
    vmem_limit = int(min(max(vmem_phys * 7 // 10, 32 << 20), 96 << 20))

    if block_b is None:
        img_bytes = C * HW * 4
        # per-image live intermediates inside the loop body (all f32):
        #   tap stack (9*CRp), y1/y2/y3 (3*CRp), attn/out temporaries (~3*C)
        inter_bytes = (9 * CRp + 3 * CRp + 3 * C) * HW * 4
        weight_bytes = 4 * (2 * C * CR + CRp * C + 2 * CRp * 9 * CRp
                            + 16 * CRp + 9 * HW)
        budget = int(vmem_limit * 0.8) - inter_bytes - weight_bytes
        cap = max(1, budget // (4 * img_bytes))   # in+out blocks, double-buffered
        block_b = max(1, min(cap, B))
    block_b = max(1, min(block_b, B))
    while B % block_b:
        block_b -= 1
    if two_tc and B > 1:
        # 2 TensorCores (v7x): keep >= 2 grid steps, prefer an even step count
        # so neither core idles on a tail step.
        block_b = max(1, min(block_b, B // 2))
        while B % block_b:
            block_b -= 1
        if (B // block_b) % 2:
            for cand in range(block_b, 0, -1):
                if B % cand == 0 and (B // cand) % 2 == 0:
                    block_b = cand
                    break
    grid_b = B // block_b

    kernel = functools.partial(_bam_kernel, shifts)
    weights = [p['wm1'], p['bm1'], wm2f, bm2f, wc1p, bc1p,
               wd1f, bd1f, wd2f, bd2f, wc3p, bc3f]

    in_specs = [pl.BlockSpec((block_b, C, HW), lambda b: (b, 0, 0)),
                pl.BlockSpec(mask_arr.shape, lambda b: (0, 0))]
    in_specs += [pl.BlockSpec(w.shape, lambda b: (0, 0)) for w in weights]

    out = pl.pallas_call(
        kernel,
        out_shape=jax.ShapeDtypeStruct((B, C, HW), jnp.float32),
        grid=(grid_b,),
        in_specs=in_specs,
        out_specs=pl.BlockSpec((block_b, C, HW), lambda b: (b, 0, 0)),
        scratch_shapes=[pltpu.VMEM((9 * CRp, HW), jnp.float32)],
        compiler_params=pltpu.CompilerParams(
            dimension_semantics=("parallel",),
            vmem_limit_bytes=vmem_limit),
    )(x3, mask_arr, *weights)
    return out.reshape(B, C, H, W)


# --------------------- deterministic parameter init ---------------------
def init_params(key, C, reduction=16):
    CR = C // reduction
    ks = jax.random.split(key, 16)

    def u(k, shape, fan_in):
        s = 1.0 / np.sqrt(fan_in)
        return jax.random.uniform(k, shape, jnp.float32, -s, s)

    bn_scale = jnp.float32(1.0 / np.sqrt(1.0 + EPS))   # gamma=1, var=1 (eval)
    p = {}
    # ChannelGate MLP: Linear(C->CR), Linear(CR->C); BatchNorm1d(C)
    p['wm1'] = u(ks[0], (CR, C), C)
    p['bm1'] = u(ks[1], (CR, 1), C)
    p['wm2'] = u(ks[2], (C, CR), CR)
    p['bm2'] = u(ks[3], (C, 1), CR)
    p['cbn_s'] = jnp.full((C, 1), bn_scale, jnp.float32)
    p['cbn_b'] = jnp.zeros((C, 1), jnp.float32)

    # SpatialGate: 1x1 conv (C->CR)
    p['wc1'] = u(ks[4], (CR, C), C)
    p['bc1'] = u(ks[5], (CR, 1), C)
    p['wc1_4d'] = p['wc1'].reshape(CR, C, 1, 1)

    # two dilated 3x3 convs (CR->CR), each + BN2d + ReLU
    for i, (kw_, kb_) in enumerate(((6, 7), (8, 9)), start=1):
        w4 = u(ks[kw_], (CR, CR, 3, 3), CR * 9)
        b = u(ks[kb_], (CR, 1), CR * 9)
        p[f'wd{i}_4d'] = w4
        p[f'bd{i}'] = b
        p[f'bn{i}_s'] = jnp.full((CR, 1), bn_scale, jnp.float32)
        p[f'bn{i}_b'] = jnp.zeros((CR, 1), jnp.float32)

    # 1x1 conv (CR->1) + BatchNorm2d(1)
    wc3 = u(ks[10], (1, CR), CR)
    p['wc3'] = wc3
    p['wc3_4d'] = wc3.reshape(1, CR, 1, 1)
    p['bc3'] = u(ks[11], (1, 1), CR)
    p['sbn_s'] = jnp.full((1, 1), bn_scale, jnp.float32)
    p['sbn_b'] = jnp.zeros((1, 1), jnp.float32)
    return p


# --------------------- pure-JAX reference (for verification) ---------------------
def bam_reference(x, p):
    dn = ('NCHW', 'OIHW', 'NCHW')
    # channel gate
    pooled = jnp.mean(x, axis=(2, 3))                                   # (B, C)
    h1 = jnp.maximum(pooled @ p['wm1'].T + p['bm1'][:, 0], 0.0)
    h2 = h1 @ p['wm2'].T + p['bm2'][:, 0]
    ch = (h2 * p['cbn_s'][:, 0] + p['cbn_b'][:, 0])[:, :, None, None]
    # spatial gate
    y = lax.conv_general_dilated(x, p['wc1_4d'], (1, 1), 'VALID',
                                 dimension_numbers=dn) + p['bc1'].reshape(1, -1, 1, 1)
    for i in (1, 2):
        y = lax.conv_general_dilated(y, p[f'wd{i}_4d'], (1, 1),
                                     [(DIL, DIL), (DIL, DIL)],
                                     rhs_dilation=(DIL, DIL),
                                     dimension_numbers=dn) + p[f'bd{i}'].reshape(1, -1, 1, 1)
        y = jnp.maximum(y * p[f'bn{i}_s'].reshape(1, -1, 1, 1)
                        + p[f'bn{i}_b'].reshape(1, -1, 1, 1), 0.0)
    y = lax.conv_general_dilated(y, p['wc3_4d'], (1, 1), 'VALID',
                                 dimension_numbers=dn) + p['bc3'].reshape(1, 1, 1, 1)
    sp = y * p['sbn_s'].reshape(1, 1, 1, 1) + p['sbn_b'].reshape(1, 1, 1, 1)
    attn = jax.nn.sigmoid(ch + sp)
    return x + x * attn


if __name__ == "__main__":
    key = jax.random.PRNGKey(0)
    kx, kp = jax.random.split(key)

    B, C, H, W = 2, 32, 16, 16          # channel must be divisible by reduction=16
    x = jax.random.normal(kx, (B, C, H, W), jnp.float32)
    params = init_params(kp, C)

    out = jax.block_until_ready(bam_pallas(x, params))
    ref = jax.block_until_ready(bam_reference(x, params))
    np.testing.assert_allclose(np.asarray(out), np.asarray(ref),
                               rtol=1e-3, atol=1e-3)
    print("KERNEL_OK")
</pallas_src>

<mosaic_0001>
module attributes {stable_mosaic.version = 11 : i64} {
  func.func @_bam_kernel(%arg0: i32, %arg1: memref<2x32x256xf32, #tpu.memory_space<vmem>>, %arg2: memref<9x256xf32, #tpu.memory_space<vmem>>, %arg3: memref<2x32xf32, #tpu.memory_space<vmem>>, %arg4: memref<2x1xf32, #tpu.memory_space<vmem>>, %arg5: memref<32x2xf32, #tpu.memory_space<vmem>>, %arg6: memref<32x1xf32, #tpu.memory_space<vmem>>, %arg7: memref<8x32xf32, #tpu.memory_space<vmem>>, %arg8: memref<8x1xf32, #tpu.memory_space<vmem>>, %arg9: memref<8x72xf32, #tpu.memory_space<vmem>>, %arg10: memref<8x1xf32, #tpu.memory_space<vmem>>, %arg11: memref<8x72xf32, #tpu.memory_space<vmem>>, %arg12: memref<8x1xf32, #tpu.memory_space<vmem>>, %arg13: memref<1x8xf32, #tpu.memory_space<vmem>>, %arg14: memref<1x1xf32, #tpu.memory_space<vmem>>, %arg15: memref<2x32x256xf32, #tpu.memory_space<vmem>>, %arg16: memref<72x256xf32, #tpu.memory_space<vmem>>) attributes {dimension_semantics = [#tpu.dimension_semantics<parallel>], iteration_bounds = array<i64: 1>, scalar_prefetch = 0 : i64, scratch_operands = 1 : i64, tpu.core_type = #tpu.core_type<tc>, window_params = [{transform_indices = @transform_0, window_bounds = array<i64: 2, 32, 256>}, {pipeline_mode = #tpu.pipeline_mode<synchronous>, transform_indices = @transform_1, window_bounds = array<i64: 9, 256>}, {pipeline_mode = #tpu.pipeline_mode<synchronous>, transform_indices = @transform_2, window_bounds = array<i64: 2, 32>}, {pipeline_mode = #tpu.pipeline_mode<synchronous>, transform_indices = @transform_3, window_bounds = array<i64: 2, 1>}, {pipeline_mode = #tpu.pipeline_mode<synchronous>, transform_indices = @transform_4, window_bounds = array<i64: 32, 2>}, {pipeline_mode = #tpu.pipeline_mode<synchronous>, transform_indices = @transform_5, window_bounds = array<i64: 32, 1>}, {pipeline_mode = #tpu.pipeline_mode<synchronous>, transform_indices = @transform_6, window_bounds = array<i64: 8, 32>}, {pipeline_mode = #tpu.pipeline_mode<synchronous>, transform_indices = @transform_7, window_bounds = array<i64: 8, 1>}, {pipeline_mode = #tpu.pipeline_mode<synchronous>, transform_indices = @transform_8, window_bounds = array<i64: 8, 72>}, {pipeline_mode = #tpu.pipeline_mode<synchronous>, transform_indices = @transform_9, window_bounds = array<i64: 8, 1>}, {pipeline_mode = #tpu.pipeline_mode<synchronous>, transform_indices = @transform_10, window_bounds = array<i64: 8, 72>}, {pipeline_mode = #tpu.pipeline_mode<synchronous>, transform_indices = @transform_11, window_bounds = array<i64: 8, 1>}, {pipeline_mode = #tpu.pipeline_mode<synchronous>, transform_indices = @transform_12, window_bounds = array<i64: 1, 8>}, {pipeline_mode = #tpu.pipeline_mode<synchronous>, transform_indices = @transform_13, window_bounds = array<i64: 1, 1>}, {transform_indices = @transform_14, window_bounds = array<i64: 2, 32, 256>}]} {
    %cst = arith.constant 3.906250e-03 : f32
    %c0_i32 = arith.constant 0 : i32
    %c2_i32 = arith.constant 2 : i32
    %0 = arith.addi %c0_i32, %c2_i32 : i32
    %c1_i32 = arith.constant 1 : i32
    scf.for %arg17 = %c0_i32 to %0 step %c1_i32  : i32 {
      %1 = arith.index_cast %arg17 : i32 to index
      %c0 = arith.constant 0 : index
      %c0_1 = arith.constant 0 : index
      %2 = vector.load %arg1[%1, %c0, %c0_1] : memref<2x32x256xf32, #tpu.memory_space<vmem>>, vector<1x32x256xf32>
      %3 = vector.shape_cast %2 : vector<1x32x256xf32> to vector<32x256xf32>
      %cst_2 = arith.constant dense<0.000000e+00> : vector<32xf32>
      %4 = vector.multi_reduction <add>, %3, %cst_2 [1] : vector<32x256xf32> to vector<32xf32>
      %5 = vector.shape_cast %4 : vector<32xf32> to vector<32x1xf32>
      %6 = vector.broadcast %cst : f32 to vector<32x1xf32>
      %7 = arith.mulf %5, %6 : vector<32x1xf32>
      %8 = vector.shape_cast %7 : vector<32x1xf32> to vector<32x1xf32>
      %9 = vector.broadcast %8 : vector<32x1xf32> to vector<32x128xf32>
      %c0_3 = arith.constant 0 : index
      %c0_4 = arith.constant 0 : index
      %10 = vector.load %arg3[%c0_3, %c0_4] : memref<2x32xf32, #tpu.memory_space<vmem>>, vector<2x32xf32>
      %cst_5 = arith.constant dense<0.000000e+00> : vector<2x128xf32>
      %11 = tpu.matmul %10, %9, %cst_5 {dimension_numbers = #tpu.dot_dimension_numbers<[1], [0], [0], [1], [0, 0, 1, 1], [], []>} : vector<2x32xf32>, vector<32x128xf32>, vector<2x128xf32> -> vector<2x128xf32>
      %c0_6 = arith.constant 0 : index
      %c0_7 = arith.constant 0 : index
      %12 = vector.load %arg4[%c0_6, %c0_7] : memref<2x1xf32, #tpu.memory_space<vmem>>, vector<2x1xf32>
      %13 = vector.broadcast %12 : vector<2x1xf32> to vector<2x128xf32>
      %14 = arith.addf %11, %13 : vector<2x128xf32>
      %cst_8 = arith.constant 0.000000e+00 : f32
      %15 = vector.broadcast %cst_8 : f32 to vector<2x128xf32>
      %16 = arith.maximumf %14, %15 : vector<2x128xf32>
      %c0_9 = arith.constant 0 : index
      %c0_10 = arith.constant 0 : index
      %17 = vector.load %arg5[%c0_9, %c0_10] : memref<32x2xf32, #tpu.memory_space<vmem>>, vector<32x2xf32>
      %cst_11 = arith.constant dense<0.000000e+00> : vector<32x128xf32>
      %18 = tpu.matmul %17, %16, %cst_11 {dimension_numbers = #tpu.dot_dimension_numbers<[1], [0], [0], [1], [0, 0, 1, 1], [], []>} : vector<32x2xf32>, vector<2x128xf32>, vector<32x128xf32> -> vector<32x128xf32>
      %c0_12 = arith.constant 0 : index
      %c0_13 = arith.constant 0 : index
      %19 = vector.load %arg6[%c0_12, %c0_13] : memref<32x1xf32, #tpu.memory_space<vmem>>, vector<32x1xf32>
      %20 = vector.broadcast %19 : vector<32x1xf32> to vector<32x128xf32>
      %21 = arith.addf %18, %20 : vector<32x128xf32>
      %22 = vector.extract_strided_slice %21 {offsets = [0, 0], sizes = [32, 1], strides = [1, 1]} : vector<32x128xf32> to vector<32x1xf32>
      %c0_14 = arith.constant 0 : index
      %c0_15 = arith.constant 0 : index
      %23 = vector.load %arg7[%c0_14, %c0_15] : memref<8x32xf32, #tpu.memory_space<vmem>>, vector<8x32xf32>
      %cst_16 = arith.constant dense<0.000000e+00> : vector<8x256xf32>
      %24 = tpu.matmul %23, %3, %cst_16 {dimension_numbers = #tpu.dot_dimension_numbers<[1], [0], [0], [1], [0, 0, 1, 1], [], []>} : vector<8x32xf32>, vector<32x256xf32>, vector<8x256xf32> -> vector<8x256xf32>
      %c0_17 = arith.constant 0 : index
      %c0_18 = arith.constant 0 : index
      %25 = vector.load %arg8[%c0_17, %c0_18] : memref<8x1xf32, #tpu.memory_space<vmem>>, vector<8x1xf32>
      %26 = vector.broadcast %25 : vector<8x1xf32> to vector<8x256xf32>
      %27 = arith.addf %24, %26 : vector<8x256xf32>
      %c68_i32 = arith.constant 68 : i32
      %28 = tpu.dynamic_rotate %27 by %c68_i32 dim 1 : vector<8x256xf32>, i32 -> vector<8x256xf32>
      %c0_19 = arith.constant 0 : index
      %c0_20 = arith.constant 0 : index
      %29 = vector.load %arg2[%c0_19, %c0_20] : memref<9x256xf32, #tpu.memory_space<vmem>>, vector<1x256xf32>
      %30 = vector.broadcast %29 : vector<1x256xf32> to vector<8x256xf32>
      %31 = arith.mulf %28, %30 : vector<8x256xf32>
      %c0_21 = arith.constant 0 : index
      %c0_22 = arith.constant 0 : index
      %32 = vector.load %arg16[%c0_21, %c0_22] : memref<72x256xf32, #tpu.memory_space<vmem>>, vector<8x256xf32>
      tpu.vector_store %arg16[%c0_21, %c0_22], %31 {strides = array<i32>} : memref<72x256xf32, #tpu.memory_space<vmem>>, vector<8x256xf32>,
      %c64_i32 = arith.constant 64 : i32
      %33 = tpu.dynamic_rotate %27 by %c64_i32 dim 1 : vector<8x256xf32>, i32 -> vector<8x256xf32>
      %c1 = arith.constant 1 : index
      %c0_23 = arith.constant 0 : index
      %34 = vector.load %arg2[%c1, %c0_23] : memref<9x256xf32, #tpu.memory_space<vmem>>, vector<1x256xf32>
      %35 = vector.broadcast %34 : vector<1x256xf32> to vector<8x256xf32>
      %36 = arith.mulf %33, %35 : vector<8x256xf32>
      %c8 = arith.constant 8 : index
      %c0_24 = arith.constant 0 : index
      %37 = vector.load %arg16[%c8, %c0_24] : memref<72x256xf32, #tpu.memory_space<vmem>>, vector<8x256xf32>
      tpu.vector_store %arg16[%c8, %c0_24], %36 {strides = array<i32>} : memref<72x256xf32, #tpu.memory_space<vmem>>, vector<8x256xf32>,
      %c60_i32 = arith.constant 60 : i32
      %38 = tpu.dynamic_rotate %27 by %c60_i32 dim 1 : vector<8x256xf32>, i32 -> vector<8x256xf32>
      %c2 = arith.constant 2 : index
      %c0_25 = arith.constant 0 : index
      %39 = vector.load %arg2[%c2, %c0_25] : memref<9x256xf32, #tpu.memory_space<vmem>>, vector<1x256xf32>
      %40 = vector.broadcast %39 : vector<1x256xf32> to vector<8x256xf32>
      %41 = arith.mulf %38, %40 : vector<8x256xf32>
      %c16 = arith.constant 16 : index
      %c0_26 = arith.constant 0 : index
      %42 = vector.load %arg16[%c16, %c0_26] : memref<72x256xf32, #tpu.memory_space<vmem>>, vector<8x256xf32>
      tpu.vector_store %arg16[%c16, %c0_26], %41 {strides = array<i32>} : memref<72x256xf32, #tpu.memory_space<vmem>>, vector<8x256xf32>,
      %c4_i32 = arith.constant 4 : i32
      %43 = tpu.dynamic_rotate %27 by %c4_i32 dim 1 : vector<8x256xf32>, i32 -> vector<8x256xf32>
      %c3 = arith.constant 3 : index
      %c0_27 = arith.constant 0 : index
      %44 = vector.load %arg2[%c3, %c0_27] : memref<9x256xf32, #tpu.memory_space<vmem>>, vector<1x256xf32>
      %45 = vector.broadcast %44 : vector<1x256xf32> to vector<8x256xf32>
      %46 = arith.mulf %43, %45 : vector<8x256xf32>
      %c24 = arith.constant 24 : index
      %c0_28 = arith.constant 0 : index
      %47 = vector.load %arg16[%c24, %c0_28] : memref<72x256xf32, #tpu.memory_space<vmem>>, vector<8x256xf32>
      tpu.vector_store %arg16[%c24, %c0_28], %46 {strides = array<i32>} : memref<72x256xf32, #tpu.memory_space<vmem>>, vector<8x256xf32>,
      %c4 = arith.constant 4 : index
      %c0_29 = arith.constant 0 : index
      %48 = vector.load %arg2[%c4, %c0_29] : memref<9x256xf32, #tpu.memory_space<vmem>>, vector<1x256xf32>
      %49 = vector.broadcast %48 : vector<1x256xf32> to vector<8x256xf32>
      %50 = arith.mulf %27, %49 : vector<8x256xf32>
      %c32 = arith.constant 32 : index
      %c0_30 = arith.constant 0 : index
      %51 = vector.load %arg16[%c32, %c0_30] : memref<72x256xf32, #tpu.memory_space<vmem>>, vector<8x256xf32>
      tpu.vector_store %arg16[%c32, %c0_30], %50 {strides = array<i32>} : memref<72x256xf32, #tpu.memory_space<vmem>>, vector<8x256xf32>,
      %c252_i32 = arith.constant 252 : i32
      %52 = tpu.dynamic_rotate %27 by %c252_i32 dim 1 : vector<8x256xf32>, i32 -> vector<8x256xf32>
      %c5 = arith.constant 5 : index
      %c0_31 = arith.constant 0 : index
      %53 = vector.load %arg2[%c5, %c0_31] : memref<9x256xf32, #tpu.memory_space<vmem>>, vector<1x256xf32>
      %54 = vector.broadcast %53 : vector<1x256xf32> to vector<8x256xf32>
      %55 = arith.mulf %52, %54 : vector<8x256xf32>
      %c40 = arith.constant 40 : index
      %c0_32 = arith.constant 0 : index
      %56 = vector.load %arg16[%c40, %c0_32] : memref<72x256xf32, #tpu.memory_space<vmem>>, vector<8x256xf32>
      tpu.vector_store %arg16[%c40, %c0_32], %55 {strides = array<i32>} : memref<72x256xf32, #tpu.memory_space<vmem>>, vector<8x256xf32>,
      %c196_i32 = arith.constant 196 : i32
      %57 = tpu.dynamic_rotate %27 by %c196_i32 dim 1 : vector<8x256xf32>, i32 -> vector<8x256xf32>
      %c6 = arith.constant 6 : index
      %c0_33 = arith.constant 0 : index
      %58 = vector.load %arg2[%c6, %c0_33] : memref<9x256xf32, #tpu.memory_space<vmem>>, vector<1x256xf32>
      %59 = vector.broadcast %58 : vector<1x256xf32> to vector<8x256xf32>
      %60 = arith.mulf %57, %59 : vector<8x256xf32>
      %c48 = arith.constant 48 : index
      %c0_34 = arith.constant 0 : index
      %61 = vector.load %arg16[%c48, %c0_34] : memref<72x256xf32, #tpu.memory_space<vmem>>, vector<8x256xf32>
      tpu.vector_store %arg16[%c48, %c0_34], %60 {strides = array<i32>} : memref<72x256xf32, #tpu.memory_space<vmem>>, vector<8x256xf32>,
      %c192_i32 = arith.constant 192 : i32
      %62 = tpu.dynamic_rotate %27 by %c192_i32 dim 1 : vector<8x256xf32>, i32 -> vector<8x256xf32>
      %c7 = arith.constant 7 : index
      %c0_35 = arith.constant 0 : index
      %63 = vector.load %arg2[%c7, %c0_35] : memref<9x256xf32, #tpu.memory_space<vmem>>, vector<1x256xf32>
      %64 = vector.broadcast %63 : vector<1x256xf32> to vector<8x256xf32>
      %65 = arith.mulf %62, %64 : vector<8x256xf32>
      %c56 = arith.constant 56 : index
      %c0_36 = arith.constant 0 : index
      %66 = vector.load %arg16[%c56, %c0_36] : memref<72x256xf32, #tpu.memory_space<vmem>>, vector<8x256xf32>
      tpu.vector_store %arg16[%c56, %c0_36], %65 {strides = array<i32>} : memref<72x256xf32, #tpu.memory_space<vmem>>, vector<8x256xf32>,
      %c188_i32 = arith.constant 188 : i32
      %67 = tpu.dynamic_rotate %27 by %c188_i32 dim 1 : vector<8x256xf32>, i32 -> vector<8x256xf32>
      %c8_37 = arith.constant 8 : index
      %c0_38 = arith.constant 0 : index
      %68 = vector.load %arg2[%c8_37, %c0_38] : memref<9x256xf32, #tpu.memory_space<vmem>>, vector<1x256xf32>
      %69 = vector.broadcast %68 : vector<1x256xf32> to vector<8x256xf32>
      %70 = arith.mulf %67, %69 : vector<8x256xf32>
      %c64 = arith.constant 64 : index
      %c0_39 = arith.constant 0 : index
      %71 = vector.load %arg16[%c64, %c0_39] : memref<72x256xf32, #tpu.memory_space<vmem>>, vector<8x256xf32>
      tpu.vector_store %arg16[%c64, %c0_39], %70 {strides = array<i32>} : memref<72x256xf32, #tpu.memory_space<vmem>>, vector<8x256xf32>,
      %c0_40 = arith.constant 0 : index
      %c0_41 = arith.constant 0 : index
      %72 = vector.load %arg9[%c0_40, %c0_41] : memref<8x72xf32, #tpu.memory_space<vmem>>, vector<8x72xf32>
      %c0_42 = arith.constant 0 : index
      %c0_43 = arith.constant 0 : index
      %73 = vector.load %arg16[%c0_42, %c0_43] : memref<72x256xf32, #tpu.memory_space<vmem>>, vector<72x256xf32>
      %cst_44 = arith.constant dense<0.000000e+00> : vector<8x256xf32>
      %74 = tpu.matmul %72, %73, %cst_44 {dimension_numbers = #tpu.dot_dimension_numbers<[1], [0], [0], [1], [0, 0, 1, 1], [], []>} : vector<8x72xf32>, vector<72x256xf32>, vector<8x256xf32> -> vector<8x256xf32>
      %c0_45 = arith.constant 0 : index
      %c0_46 = arith.constant 0 : index
      %75 = vector.load %arg10[%c0_45, %c0_46] : memref<8x1xf32, #tpu.memory_space<vmem>>, vector<8x1xf32>
      %76 = vector.broadcast %75 : vector<8x1xf32> to vector<8x256xf32>
      %77 = arith.addf %74, %76 : vector<8x256xf32>
      %cst_47 = arith.constant 0.000000e+00 : f32
      %78 = vector.broadcast %cst_47 : f32 to vector<8x256xf32>
      %79 = arith.maximumf %77, %78 : vector<8x256xf32>
      %c68_i32_48 = arith.constant 68 : i32
      %80 = tpu.dynamic_rotate %79 by %c68_i32_48 dim 1 : vector<8x256xf32>, i32 -> vector<8x256xf32>
      %c0_49 = arith.constant 0 : index
      %c0_50 = arith.constant 0 : index
      %81 = vector.load %arg2[%c0_49, %c0_50] : memref<9x256xf32, #tpu.memory_space<vmem>>, vector<1x256xf32>
      %82 = vector.broadcast %81 : vector<1x256xf32> to vector<8x256xf32>
      %83 = arith.mulf %80, %82 : vector<8x256xf32>
      %c0_51 = arith.constant 0 : index
      %c0_52 = arith.constant 0 : index
      %84 = vector.load %arg16[%c0_51, %c0_52] : memref<72x256xf32, #tpu.memory_space<vmem>>, vector<8x256xf32>
      tpu.vector_store %arg16[%c0_51, %c0_52], %83 {strides = array<i32>} : memref<72x256xf32, #tpu.memory_space<vmem>>, vector<8x256xf32>,
      %c64_i32_53 = arith.constant 64 : i32
      %85 = tpu.dynamic_rotate %79 by %c64_i32_53 dim 1 : vector<8x256xf32>, i32 -> vector<8x256xf32>
      %c1_54 = arith.constant 1 : index
      %c0_55 = arith.constant 0 : index
      %86 = vector.load %arg2[%c1_54, %c0_55] : memref<9x256xf32, #tpu.memory_space<vmem>>, vector<1x256xf32>
      %87 = vector.broadcast %86 : vector<1x256xf32> to vector<8x256xf32>
      %88 = arith.mulf %85, %87 : vector<8x256xf32>
      %c8_56 = arith.constant 8 : index
      %c0_57 = arith.constant 0 : index
      %89 = vector.load %arg16[%c8_56, %c0_57] : memref<72x256xf32, #tpu.memory_space<vmem>>, vector<8x256xf32>
      tpu.vector_store %arg16[%c8_56, %c0_57], %88 {strides = array<i32>} : memref<72x256xf32, #tpu.memory_space<vmem>>, vector<8x256xf32>,
      %c60_i32_58 = arith.constant 60 : i32
      %90 = tpu.dynamic_rotate %79 by %c60_i32_58 dim 1 : vector<8x256xf32>, i32 -> vector<8x256xf32>
      %c2_59 = arith.constant 2 : index
      %c0_60 = arith.constant 0 : index
      %91 = vector.load %arg2[%c2_59, %c0_60] : memref<9x256xf32, #tpu.memory_space<vmem>>, vector<1x256xf32>
      %92 = vector.broadcast %91 : vector<1x256xf32> to vector<8x256xf32>
      %93 = arith.mulf %90, %92 : vector<8x256xf32>
      %c16_61 = arith.constant 16 : index
      %c0_62 = arith.constant 0 : index
      %94 = vector.load %arg16[%c16_61, %c0_62] : memref<72x256xf32, #tpu.memory_space<vmem>>, vector<8x256xf32>
      tpu.vector_store %arg16[%c16_61, %c0_62], %93 {strides = array<i32>} : memref<72x256xf32, #tpu.memory_space<vmem>>, vector<8x256xf32>,
      %c4_i32_63 = arith.constant 4 : i32
      %95 = tpu.dynamic_rotate %79 by %c4_i32_63 dim 1 : vector<8x256xf32>, i32 -> vector<8x256xf32>
      %c3_64 = arith.constant 3 : index
      %c0_65 = arith.constant 0 : index
      %96 = vector.load %arg2[%c3_64, %c0_65] : memref<9x256xf32, #tpu.memory_space<vmem>>, vector<1x256xf32>
      %97 = vector.broadcast %96 : vector<1x256xf32> to vector<8x256xf32>
      %98 = arith.mulf %95, %97 : vector<8x256xf32>
      %c24_66 = arith.constant 24 : index
      %c0_67 = arith.constant 0 : index
      %99 = vector.load %arg16[%c24_66, %c0_67] : memref<72x256xf32, #tpu.memory_space<vmem>>, vector<8x256xf32>
      tpu.vector_store %arg16[%c24_66, %c0_67], %98 {strides = array<i32>} : memref<72x256xf32, #tpu.memory_space<vmem>>, vector<8x256xf32>,
      %c4_68 = arith.constant 4 : index
      %c0_69 = arith.constant 0 : index
      %100 = vector.load %arg2[%c4_68, %c0_69] : memref<9x256xf32, #tpu.memory_space<vmem>>, vector<1x256xf32>
      %101 = vector.broadcast %100 : vector<1x256xf32> to vector<8x256xf32>
      %102 = arith.mulf %79, %101 : vector<8x256xf32>
      %c32_70 = arith.constant 32 : index
      %c0_71 = arith.constant 0 : index
      %103 = vector.load %arg16[%c32_70, %c0_71] : memref<72x256xf32, #tpu.memory_space<vmem>>, vector<8x256xf32>
      tpu.vector_store %arg16[%c32_70, %c0_71], %102 {strides = array<i32>} : memref<72x256xf32, #tpu.memory_space<vmem>>, vector<8x256xf32>,
      %c252_i32_72 = arith.constant 252 : i32
      %104 = tpu.dynamic_rotate %79 by %c252_i32_72 dim 1 : vector<8x256xf32>, i32 -> vector<8x256xf32>
      %c5_73 = arith.constant 5 : index
      %c0_74 = arith.constant 0 : index
      %105 = vector.load %arg2[%c5_73, %c0_74] : memref<9x256xf32, #tpu.memory_space<vmem>>, vector<1x256xf32>
      %106 = vector.broadcast %105 : vector<1x256xf32> to vector<8x256xf32>
      %107 = arith.mulf %104, %106 : vector<8x256xf32>
      %c40_75 = arith.constant 40 : index
      %c0_76 = arith.constant 0 : index
      %108 = vector.load %arg16[%c40_75, %c0_76] : memref<72x256xf32, #tpu.memory_space<vmem>>, vector<8x256xf32>
      tpu.vector_store %arg16[%c40_75, %c0_76], %107 {strides = array<i32>} : memref<72x256xf32, #tpu.memory_space<vmem>>, vector<8x256xf32>,
      %c196_i32_77 = arith.constant 196 : i32
      %109 = tpu.dynamic_rotate %79 by %c196_i32_77 dim 1 : vector<8x256xf32>, i32 -> vector<8x256xf32>
      %c6_78 = arith.constant 6 : index
      %c0_79 = arith.constant 0 : index
      %110 = vector.load %arg2[%c6_78, %c0_79] : memref<9x256xf32, #tpu.memory_space<vmem>>, vector<1x256xf32>
      %111 = vector.broadcast %110 : vector<1x256xf32> to vector<8x256xf32>
      %112 = arith.mulf %109, %111 : vector<8x256xf32>
      %c48_80 = arith.constant 48 : index
      %c0_81 = arith.constant 0 : index
      %113 = vector.load %arg16[%c48_80, %c0_81] : memref<72x256xf32, #tpu.memory_space<vmem>>, vector<8x256xf32>
      tpu.vector_store %arg16[%c48_80, %c0_81], %112 {strides = array<i32>} : memref<72x256xf32, #tpu.memory_space<vmem>>, vector<8x256xf32>,
      %c192_i32_82 = arith.constant 192 : i32
      %114 = tpu.dynamic_rotate %79 by %c192_i32_82 dim 1 : vector<8x256xf32>, i32 -> vector<8x256xf32>
      %c7_83 = arith.constant 7 : index
      %c0_84 = arith.constant 0 : index
      %115 = vector.load %arg2[%c7_83, %c0_84] : memref<9x256xf32, #tpu.memory_space<vmem>>, vector<1x256xf32>
      %116 = vector.broadcast %115 : vector<1x256xf32> to vector<8x256xf32>
      %117 = arith.mulf %114, %116 : vector<8x256xf32>
      %c56_85 = arith.constant 56 : index
      %c0_86 = arith.constant 0 : index
      %118 = vector.load %arg16[%c56_85, %c0_86] : memref<72x256xf32, #tpu.memory_space<vmem>>, vector<8x256xf32>
      tpu.vector_store %arg16[%c56_85, %c0_86], %117 {strides = array<i32>} : memref<72x256xf32, #tpu.memory_space<vmem>>, vector<8x256xf32>,
      %c188_i32_87 = arith.constant 188 : i32
      %119 = tpu.dynamic_rotate %79 by %c188_i32_87 dim 1 : vector<8x256xf32>, i32 -> vector<8x256xf32>
      %c8_88 = arith.constant 8 : index
      %c0_89 = arith.constant 0 : index
      %120 = vector.load %arg2[%c8_88, %c0_89] : memref<9x256xf32, #tpu.memory_space<vmem>>, vector<1x256xf32>
      %121 = vector.broadcast %120 : vector<1x256xf32> to vector<8x256xf32>
      %122 = arith.mulf %119, %121 : vector<8x256xf32>
      %c64_90 = arith.constant 64 : index
      %c0_91 = arith.constant 0 : index
      %123 = vector.load %arg16[%c64_90, %c0_91] : memref<72x256xf32, #tpu.memory_space<vmem>>, vector<8x256xf32>
      tpu.vector_store %arg16[%c64_90, %c0_91], %122 {strides = array<i32>} : memref<72x256xf32, #tpu.memory_space<vmem>>, vector<8x256xf32>,
      %c0_92 = arith.constant 0 : index
      %c0_93 = arith.constant 0 : index
      %124 = vector.load %arg11[%c0_92, %c0_93] : memref<8x72xf32, #tpu.memory_space<vmem>>, vector<8x72xf32>
      %c0_94 = arith.constant 0 : index
      %c0_95 = arith.constant 0 : index
      %125 = vector.load %arg16[%c0_94, %c0_95] : memref<72x256xf32, #tpu.memory_space<vmem>>, vector<72x256xf32>
      %cst_96 = arith.constant dense<0.000000e+00> : vector<8x256xf32>
      %126 = tpu.matmul %124, %125, %cst_96 {dimension_numbers = #tpu.dot_dimension_numbers<[1], [0], [0], [1], [0, 0, 1, 1], [], []>} : vector<8x72xf32>, vector<72x256xf32>, vector<8x256xf32> -> vector<8x256xf32>
      %c0_97 = arith.constant 0 : index
      %c0_98 = arith.constant 0 : index
      %127 = vector.load %arg12[%c0_97, %c0_98] : memref<8x1xf32, #tpu.memory_space<vmem>>, vector<8x1xf32>
      %128 = vector.broadcast %127 : vector<8x1xf32> to vector<8x256xf32>
      %129 = arith.addf %126, %128 : vector<8x256xf32>
      %cst_99 = arith.constant 0.000000e+00 : f32
      %130 = vector.broadcast %cst_99 : f32 to vector<8x256xf32>
      %131 = arith.maximumf %129, %130 : vector<8x256xf32>
      %c0_100 = arith.constant 0 : index
      %c0_101 = arith.constant 0 : index
      %132 = vector.load %arg13[%c0_100, %c0_101] : memref<1x8xf32, #tpu.memory_space<vmem>>, vector<1x8xf32>
      %cst_102 = arith.constant dense<0.000000e+00> : vector<1x256xf32>
      %133 = tpu.matmul %132, %131, %cst_102 {dimension_numbers = #tpu.dot_dimension_numbers<[1], [0], [0], [1], [0, 0, 1, 1], [], []>} : vector<1x8xf32>, vector<8x256xf32>, vector<1x256xf32> -> vector<1x256xf32>
      %c0_103 = arith.constant 0 : index
      %c0_104 = arith.constant 0 : index
      %134 = vector.load %arg14[%c0_103, %c0_104] : memref<1x1xf32, #tpu.memory_space<vmem>>, vector<1x1xf32>
      %135 = vector.broadcast %134 : vector<1x1xf32> to vector<1x256xf32>
      %136 = arith.addf %133, %135 : vector<1x256xf32>
      %137 = vector.broadcast %22 : vector<32x1xf32> to vector<32x256xf32>
      %138 = vector.broadcast %136 : vector<1x256xf32> to vector<32x256xf32>
      %139 = arith.addf %137, %138 : vector<32x256xf32>
      %140 = arith.negf %139 : vector<32x256xf32>
      %141 = math.exp %140 : vector<32x256xf32>
      %cst_105 = arith.constant 1.000000e+00 : f32
      %142 = vector.broadcast %cst_105 : f32 to vector<32x256xf32>
      %143 = arith.addf %142, %141 : vector<32x256xf32>
      %144 = arith.divf %142, %143 : vector<32x256xf32>
      %cst_106 = arith.constant 1.000000e+00 : f32
      %145 = vector.broadcast %cst_106 : f32 to vector<32x256xf32>
      %146 = arith.addf %145, %144 : vector<32x256xf32>
      %147 = arith.mulf %3, %146 : vector<32x256xf32>
      %148 = arith.index_cast %arg17 : i32 to index
      %c0_107 = arith.constant 0 : index
      %c0_108 = arith.constant 0 : index
      %149 = vector.load %arg15[%148, %c0_107, %c0_108] : memref<2x32x256xf32, #tpu.memory_space<vmem>>, vector<1x32x256xf32>
      %150 = vector.shape_cast %149 : vector<1x32x256xf32> to vector<32x256xf32>
      %151 = vector.shape_cast %147 : vector<32x256xf32> to vector<1x32x256xf32>
      tpu.vector_store %arg15[%148, %c0_107, %c0_108], %151 {strides = array<i32>} : memref<2x32x256xf32, #tpu.memory_space<vmem>>, vector<1x32x256xf32>,
    }
    %c2_i32_0 = arith.constant 2 : i32
    return
  }
  func.func @transform_0(%arg0: i32) -> (i32, i32, i32) {
    %c0_i32 = arith.constant 0 : i32
    %c0_i32_0 = arith.constant 0 : i32
    %c0_i32_1 = arith.constant 0 : i32
    return %arg0, %c0_i32, %c0_i32_0 : i32, i32, i32
  }
  func.func @transform_1(%arg0: i32) -> (i32, i32) {
    %c0_i32 = arith.constant 0 : i32
    %c0_i32_0 = arith.constant 0 : i32
    %c0_i32_1 = arith.constant 0 : i32
    return %c0_i32, %c0_i32_0 : i32, i32
  }
  func.func @transform_2(%arg0: i32) -> (i32, i32) {
    %c0_i32 = arith.constant 0 : i32
    %c0_i32_0 = arith.constant 0 : i32
    %c0_i32_1 = arith.constant 0 : i32
    return %c0_i32, %c0_i32_0 : i32, i32
  }
  func.func @transform_3(%arg0: i32) -> (i32, i32) {
    %c0_i32 = arith.constant 0 : i32
    %c0_i32_0 = arith.constant 0 : i32
    %c0_i32_1 = arith.constant 0 : i32
    return %c0_i32, %c0_i32_0 : i32, i32
  }
  func.func @transform_4(%arg0: i32) -> (i32, i32) {
    %c0_i32 = arith.constant 0 : i32
    %c0_i32_0 = arith.constant 0 : i32
    %c0_i32_1 = arith.constant 0 : i32
    return %c0_i32, %c0_i32_0 : i32, i32
  }
  func.func @transform_5(%arg0: i32) -> (i32, i32) {
    %c0_i32 = arith.constant 0 : i32
    %c0_i32_0 = arith.constant 0 : i32
    %c0_i32_1 = arith.constant 0 : i32
    return %c0_i32, %c0_i32_0 : i32, i32
  }
  func.func @transform_6(%arg0: i32) -> (i32, i32) {
    %c0_i32 = arith.constant 0 : i32
    %c0_i32_0 = arith.constant 0 : i32
    %c0_i32_1 = arith.constant 0 : i32
    return %c0_i32, %c0_i32_0 : i32, i32
  }
  func.func @transform_7(%arg0: i32) -> (i32, i32) {
    %c0_i32 = arith.constant 0 : i32
    %c0_i32_0 = arith.constant 0 : i32
    %c0_i32_1 = arith.constant 0 : i32
    return %c0_i32, %c0_i32_0 : i32, i32
  }
  func.func @transform_8(%arg0: i32) -> (i32, i32) {
    %c0_i32 = arith.constant 0 : i32
    %c0_i32_0 = arith.constant 0 : i32
    %c0_i32_1 = arith.constant 0 : i32
    return %c0_i32, %c0_i32_0 : i32, i32
  }
  func.func @transform_9(%arg0: i32) -> (i32, i32) {
    %c0_i32 = arith.constant 0 : i32
    %c0_i32_0 = arith.constant 0 : i32
    %c0_i32_1 = arith.constant 0 : i32
    return %c0_i32, %c0_i32_0 : i32, i32
  }
  func.func @transform_10(%arg0: i32) -> (i32, i32) {
    %c0_i32 = arith.constant 0 : i32
    %c0_i32_0 = arith.constant 0 : i32
    %c0_i32_1 = arith.constant 0 : i32
    return %c0_i32, %c0_i32_0 : i32, i32
  }
  func.func @transform_11(%arg0: i32) -> (i32, i32) {
    %c0_i32 = arith.constant 0 : i32
    %c0_i32_0 = arith.constant 0 : i32
    %c0_i32_1 = arith.constant 0 : i32
    return %c0_i32, %c0_i32_0 : i32, i32
  }
  func.func @transform_12(%arg0: i32) -> (i32, i32) {
    %c0_i32 = arith.constant 0 : i32
    %c0_i32_0 = arith.constant 0 : i32
    %c0_i32_1 = arith.constant 0 : i32
    return %c0_i32, %c0_i32_0 : i32, i32
  }
  func.func @transform_13(%arg0: i32) -> (i32, i32) {
    %c0_i32 = arith.constant 0 : i32
    %c0_i32_0 = arith.constant 0 : i32
    %c0_i32_1 = arith.constant 0 : i32
    return %c0_i32, %c0_i32_0 : i32, i32
  }
  func.func @transform_14(%arg0: i32) -> (i32, i32, i32) {
    %c0_i32 = arith.constant 0 : i32
    %c0_i32_0 = arith.constant 0 : i32
    %c0_i32_1 = arith.constant 0 : i32
    return %arg0, %c0_i32, %c0_i32_0 : i32, i32, i32
  }
}

</mosaic_0001>

<llo_original>
// kernel: tpu_custom_call.1
$region0: #{tpu_custom_call.1}
  #allocation0 [shape = 'u32[]', space=smem, size = 0x4, offset = 0x4, fixed_abs, tag = 'smem constant byte address 0x4 - core index']
  #allocation1 [shape = 'u32[144,128]{1,0:T(1,128)}', space=vmem, size = 0x12000, scoped, tag = 'internal scratch']
  #allocation2 [shape = 'f32[72,256]{1,0:T(8,128)}', space=vmem, size = 0x12000, scoped, tag = 'scratch operand']
  #allocation3 [shape = 'f32[1,1]{1,0:T(1,128)S(1)}', space=vmem, size = 0x200, scoped, tag = 'scoped memory for tpu_custom_call.1']
  %s0 = inlined_call_operand.hbm [shape: f32[2,32,256], index: 0, kind: input, shape index: {}]
  %s1 = inlined_call_operand.vmem [shape: f32[9,256], index: 1, kind: input, shape index: {}]
  %s2 = inlined_call_operand.vmem [shape: f32[2,32], index: 2, kind: input, shape index: {}]
  %s3 = inlined_call_operand.vmem [shape: f32[2,1], index: 3, kind: input, shape index: {}]
  %s4 = inlined_call_operand.vmem [shape: f32[32,2], index: 4, kind: input, shape index: {}]
  %s5 = inlined_call_operand.vmem [shape: f32[32,1], index: 5, kind: input, shape index: {}]
  %s6 = inlined_call_operand.vmem [shape: f32[8,32], index: 6, kind: input, shape index: {}]
  %s7 = inlined_call_operand.vmem [shape: f32[8,1], index: 7, kind: input, shape index: {}]
  %s8 = inlined_call_operand.vmem [shape: f32[8,72], index: 8, kind: input, shape index: {}]
  %s9 = inlined_call_operand.vmem [shape: f32[8,1], index: 9, kind: input, shape index: {}]
  %s10 = inlined_call_operand.vmem [shape: f32[8,72], index: 10, kind: input, shape index: {}]
  %s11 = inlined_call_operand.vmem [shape: f32[8,1], index: 11, kind: input, shape index: {}]
  %s12 = inlined_call_operand.vmem [shape: f32[1,8], index: 12, kind: input, shape index: {}]
  %s13 = inlined_call_operand.<no memory space> [shape: f32[1,1], index: 13, kind: input, shape index: {}]
  %s14 = inlined_call_operand.hbm [shape: f32[2,32,256], index: 14, kind: output, shape index: {}]
  %s15 = sld [smem:[#allocation0]]
  $region77: #{tpu_custom_call.1} parent=0
    _
  %s17 = ssub.s32 1, %s15
  %s18 = scalar_select 0, %s17, %s15
  %v19 = vstv %s13
  %20 = vst [vmem:[#allocation3] sm:$0x1] %v19
  $region1: #{tpu_custom_call.1} parent=0
    #allocation4 [shape = 'u8[65536]{0}', space=vmem, size = 0x10000, scoped, tag = 'input window, operand 0, single buffered']
    #allocation5 [shape = 's32[1]{0}', space=sflag, size = 0x4, scoped, tag = 'scoped memory for tpu_custom_call.1']
    #allocation6 [shape = 's32[1]{0}', space=sflag, size = 0x4, scoped, tag = 'scoped memory for tpu_custom_call.1']
    #allocation7 [shape = 'u8[65536]{0}', space=vmem, size = 0x10000, scoped, tag = 'output window, operand 0, single buffered']
    %21 = vsyncpa [#allocation5], 0
    %22 = vsyncpa [#allocation6], 0
    // Predicated region
    $region2: #{tpu_custom_call.1} parent=1 // pred_check
      _
    $region3: #{tpu_custom_call.1} parent=1 // pred_check_branch
      %24 = sbr.rel (0) target = $region5
    $region4: #{tpu_custom_call.1} parent=1 // pred_region
      %s26 = ssub.s32 2048, 2048
      %27 = vsyncadd [#allocation5], %s26
      %s28 = sshll.u32 [#allocation4], 4
      %s29 = int_to_ptr.vmem [resolvable:$true] %s28
      %34 = dma.hbm_to_vmem [thread:$0]  %s0, 2048, %s29, [#allocation5], 256, 256, 16
    $region5: #{tpu_custom_call.1} parent=1 // pred_fallthru
      _
    // Predicated region
    $region6: #{tpu_custom_call.1} parent=1 // pred_check
      _
    $region7: #{tpu_custom_call.1} parent=1 // pred_check_branch
      %36 = sbr.rel (0) target = $region9
    $region8: #{tpu_custom_call.1} parent=1 // pred_region
      _
    $region9: #{tpu_custom_call.1} parent=1 // pred_fallthru
      _
    // Predicated region
    $region10: #{tpu_custom_call.1} parent=1 // pred_check
      _
    $region11: #{tpu_custom_call.1} parent=1 // pred_check_branch
      %38 = sbr.rel (0) target = $region13
    $region12: #{tpu_custom_call.1} parent=1 // pred_region
      _
    $region13: #{tpu_custom_call.1} parent=1 // pred_fallthru
      _
    // Predicated region
    $region14: #{tpu_custom_call.1} parent=1 // pred_check
      _
    $region15: #{tpu_custom_call.1} parent=1 // pred_check_branch
      %40 = sbr.rel (0) target = $region17
    $region16: #{tpu_custom_call.1} parent=1 // pred_region
      _
    $region17: #{tpu_custom_call.1} parent=1 // pred_fallthru
      _
    // Predicated region
    $region18: #{tpu_custom_call.1} parent=1 // pred_check
      _
    $region19: #{tpu_custom_call.1} parent=1 // pred_check_branch
      %42 = sbr.rel (0) target = $region21
    $region20: #{tpu_custom_call.1} parent=1 // pred_region
      _
    $region21: #{tpu_custom_call.1} parent=1 // pred_fallthru
      _
    // Predicated region
    $region22: #{tpu_custom_call.1} parent=1 // pred_check
      _
    $region23: #{tpu_custom_call.1} parent=1 // pred_check_branch
      %44 = sbr.rel (0) target = $region25
    $region24: #{tpu_custom_call.1} parent=1 // pred_region
      _
    $region25: #{tpu_custom_call.1} parent=1 // pred_fallthru
      _
    // Predicated region
    $region26: #{tpu_custom_call.1} parent=1 // pred_check
      _
    $region27: #{tpu_custom_call.1} parent=1 // pred_check_branch
      %46 = sbr.rel (0) target = $region29
    $region28: #{tpu_custom_call.1} parent=1 // pred_region
      _
    $region29: #{tpu_custom_call.1} parent=1 // pred_fallthru
      _
    // Predicated region
    $region30: #{tpu_custom_call.1} parent=1 // pred_check
      _
    $region31: #{tpu_custom_call.1} parent=1 // pred_check_branch
      %48 = sbr.rel (0) target = $region33
    $region32: #{tpu_custom_call.1} parent=1 // pred_region
      _
    $region33: #{tpu_custom_call.1} parent=1 // pred_fallthru
      _
    // Predicated region
    $region34: #{tpu_custom_call.1} parent=1 // pred_check
      _
    $region35: #{tpu_custom_call.1} parent=1 // pred_check_branch
      %50 = sbr.rel (0) target = $region37
    $region36: #{tpu_custom_call.1} parent=1 // pred_region
      _
    $region37: #{tpu_custom_call.1} parent=1 // pred_fallthru
      _
    // Predicated region
    $region38: #{tpu_custom_call.1} parent=1 // pred_check
      _
    $region39: #{tpu_custom_call.1} parent=1 // pred_check_branch
      %52 = sbr.rel (0) target = $region41
    $region40: #{tpu_custom_call.1} parent=1 // pred_region
      _
    $region41: #{tpu_custom_call.1} parent=1 // pred_fallthru
      _
    // Predicated region
    $region42: #{tpu_custom_call.1} parent=1 // pred_check
      _
    $region43: #{tpu_custom_call.1} parent=1 // pred_check_branch
      %54 = sbr.rel (0) target = $region45
    $region44: #{tpu_custom_call.1} parent=1 // pred_region
      _
    $region45: #{tpu_custom_call.1} parent=1 // pred_fallthru
      _
    // Predicated region
    $region46: #{tpu_custom_call.1} parent=1 // pred_check
      _
    $region47: #{tpu_custom_call.1} parent=1 // pred_check_branch
      %56 = sbr.rel (0) target = $region49
    $region48: #{tpu_custom_call.1} parent=1 // pred_region
      _
    $region49: #{tpu_custom_call.1} parent=1 // pred_fallthru
      _
    // Predicated region
    $region50: #{tpu_custom_call.1} parent=1 // pred_check
      _
    $region51: #{tpu_custom_call.1} parent=1 // pred_check_branch
      %58 = sbr.rel (0) target = $region53
    $region52: #{tpu_custom_call.1} parent=1 // pred_region
      _
    $region53: #{tpu_custom_call.1} parent=1 // pred_fallthru
      _
    // Predicated region
    $region54: #{tpu_custom_call.1} parent=1 // pred_check
      _
    $region55: #{tpu_custom_call.1} parent=1 // pred_check_branch
      %60 = sbr.rel (0) target = $region57
    $region56: #{tpu_custom_call.1} parent=1 // pred_region
      _
    $region57: #{tpu_custom_call.1} parent=1 // pred_fallthru
      _
    // Predicated region
    $region58: #{tpu_custom_call.1} parent=1 // pred_check
      _
    $region59: #{tpu_custom_call.1} parent=1 // pred_check_branch
      %62 = sbr.rel (0) target = $region61
    $region60: #{tpu_custom_call.1} parent=1 // pred_region
      %63 = dma.done [#allocation5], 2048
    $region61: #{tpu_custom_call.1} parent=1 // pred_fallthru
      _
    loop: start=0, step=1, limit=2
    $region62: #{tpu_custom_call.1} parent=1 // loop_pre_header
      _
    $region63: #{tpu_custom_call.1} parent=1 // loop_header
      %s65 = sphi 0, %s69
      %p66 = scmp.ge.s32.totalorder %s65, 2
    $region64: #{tpu_custom_call.1} parent=1 // loop_header_branch
      %68 = sbr.rel (%p66) target = $region68
    $region65: #{tpu_custom_call.1} parent=1 // loop_body
      %s70 = smul.u32 %s65, 8
      %s71 = smul.addr %s70, 8
      %s72 = scalar_lea.vmem [#allocation4], %s71
      %v73 = vld [vmem:[%s72] sm:$0xff]
      %v74 = vld [vmem:[%s72 + $0x8] sm:$0xff]
      %v75 = vld [vmem:[%s72 + $0x10] sm:$0xff]
      %v76 = vld [vmem:[%s72 + $0x18] sm:$0xff]
      %v77 = vld [vmem:[%s72 + $0x20] sm:$0xff]
      %v78 = vld [vmem:[%s72 + $0x28] sm:$0xff]
      %v79 = vld [vmem:[%s72 + $0x30] sm:$0xff]
      %v80 = vld [vmem:[%s72 + $0x38] sm:$0xff]
      %v81 = vadd.f32 %v73, %v74
      %82 = vadd.xlane.f32.xlu0 %v81
      %v83 = vpop.xlane.xlu0 %82
      %v84 = vadd.f32 %v75, %v76
      %85 = vadd.xlane.f32.xlu0 %v84
      %v86 = vpop.xlane.xlu0 %85
      %v87 = vadd.f32 %v77, %v78
      %88 = vadd.xlane.f32.xlu0 %v87
      %v89 = vpop.xlane.xlu0 %88
      %v90 = vadd.f32 %v79, %v80
      %91 = vadd.xlane.f32.xlu0 %v90
      %v92 = vpop.xlane.xlu0 %91
      %v93 = vmul.f32 %v83, 0.00390625
      %v94 = vmul.f32 %v86, 0.00390625
      %v95 = vmul.f32 %v89, 0.00390625
      %v96 = vmul.f32 %v92, 0.00390625
      %v97 = vld [vmem:[%s2] sm:$0x3]
      %v98 = vld [vmem:[%s3] sm:$0x3]
      %100 = vset.pattern.permute.xlu0 0
      %101 = vperm.xlu0 %100, %v98
      %v102 = vpop.permute.xlu0 %101
      %vm104 = vcmask 261120
      %v106 = vsel %vm104, %v97, 0
      %108 = vmatprep.subr.mxu0 0.0
      %109 = vmatpush1.msra.mxu0 %v93
      %110 = vmatprep.subr.mxu0 0.0
      %111 = vmatpush1.msra.mxu0 %v94
      %112 = vmatprep.subr.mxu0 0.0
      %113 = vmatpush1.msra.mxu0 %v95
      %114 = vmatprep.subr.mxu0 0.0
      %115 = vmatpush1.msra.mxu0 %v96
      %116 = vmatprep.subr.mxu0 0.0
      %117 = vmatpush1.msra.mxu0 0.0
      %118 = vmatprep.subr.mxu0 0.0
      %119 = vmatpush1.msra.mxu0 0.0
      %120 = vmatprep.subr.mxu0 0.0
      %121 = vmatpush1.msra.mxu0 0.0
      %122 = vmatprep.subr.mxu0 0.0
      %123 = vmatpush1.msra.mxu0 0.0
      %124 = vmatprep.subr.mxu0 0.0
      %125 = vmatpush1.msra.mxu0 0.0
      %126 = vmatprep.subr.mxu0 0.0
      %127 = vmatpush1.msra.mxu0 0.0
      %128 = vmatprep.subr.mxu0 0.0
      %129 = vmatpush1.msra.mxu0 0.0
      %130 = vmatprep.subr.mxu0 0.0
      %131 = vmatpush1.msra.mxu0 0.0
      %132 = vmatprep.subr.mxu0 0.0
      %133 = vmatpush1.msra.mxu0 0.0
      %134 = vmatprep.subr.mxu0 0.0
      %135 = vmatpush1.msra.mxu0 0.0
      %136 = vmatprep.subr.mxu0 0.0
      %137 = vmatpush1.msra.mxu0 0.0
      %138 = vmatprep.subr.mxu0 0.0
      %139 = vmatpush1.msra.mxu0 0.0
      %140 = vmatprep.subr.mxu0 0.0
      %141 = vmatpush1.msra.mxu0 0.0
      %142 = vmatprep.subr.mxu0 0.0
      %143 = vmatpush1.msra.mxu0 0.0
      %144 = vmatprep.subr.mxu0 0.0
      %145 = vmatpush1.msra.mxu0 0.0
      %146 = vmatprep.subr.mxu0 0.0
      %147 = vmatpush1.msra.mxu0 0.0
      %148 = vmatprep.subr.mxu0 0.0
      %149 = vmatpush1.msra.mxu0 0.0
      %150 = vmatprep.subr.mxu0 0.0
      %151 = vmatpush1.msra.mxu0 0.0
      %152 = vmatprep.subr.mxu0 0.0
      %153 = vmatpush1.msra.mxu0 0.0
      %154 = vmatprep.subr.mxu0 0.0
      %155 = vmatpush1.msra.mxu0 0.0
      %156 = vmatprep.subr.mxu0 0.0
      %157 = vmatpush1.msra.mxu0 0.0
      %158 = vmatprep.subr.mxu0 0.0
      %159 = vmatpush1.msra.mxu0 0.0
      %160 = vmatprep.subr.mxu0 0.0
      %161 = vmatpush1.msra.mxu0 0.0
      %162 = vmatprep.subr.mxu0 0.0
      %163 = vmatpush1.msra.mxu0 0.0
      %164 = vmatprep.subr.mxu0 0.0
      %165 = vmatpush1.msra.mxu0 0.0
      %166 = vmatprep.subr.mxu0 0.0
      %167 = vmatpush1.msra.mxu0 0.0
      %168 = vmatprep.subr.mxu0 0.0
      %169 = vmatpush1.msra.mxu0 0.0
      %170 = vmatprep.subr.mxu0 0.0
      %171 = vmatpush1.msra.mxu0 0.0
      %172 = vmatprep.mubr.f32.mxu0 0.0
      %173 = vmatmul.mubr.f32.gmra.mrb[0].mxu0 %v106
      %v174 = vpop.f32.mrb[0].mxu0
      %v175 = vadd.f32 %v102, %v174
      %v176 = vpop.f32.mrb[0].mxu0
      %177 = vdwg.mxu0
      %v178 = vmax.f32 %v175, 0.0
      %v179 = vld [vmem:[%s4] sm:$0xff]
      %v180 = vld [vmem:[%s4 + $0x8] sm:$0xff]
      %v181 = vld [vmem:[%s4 + $0x10] sm:$0xff]
      %v182 = vld [vmem:[%s4 + $0x18] sm:$0xff]
      %v183 = vld [vmem:[%s5] sm:$0xff]
      %v184 = vld [vmem:[%s5 + $0x8] sm:$0xff]
      %v185 = vld [vmem:[%s5 + $0x10] sm:$0xff]
      %v186 = vld [vmem:[%s5 + $0x18] sm:$0xff]
      %188 = vset.pattern.permute.xlu0 0
      %189 = vperm.xlu0 %188, %v183
      %v190 = vpop.permute.xlu0 %189
      %193 = vset.pattern.permute.xlu0 0
      %194 = vperm.xlu0 %193, %v184
      %v195 = vpop.permute.xlu0 %194
      %198 = vset.pattern.permute.xlu0 0
      %199 = vperm.xlu0 %198, %v185
      %v200 = vpop.permute.xlu0 %199
      %203 = vset.pattern.permute.xlu0 0
      %204 = vperm.xlu0 %203, %v186
      %v205 = vpop.permute.xlu0 %204
      %vm207 = vcmask 15360
      %v209 = vsel %vm207, %v179, 0
      %v212 = vsel %vm207, %v180, 0
      %v215 = vsel %vm207, %v181, 0
      %v218 = vsel %vm207, %v182, 0
      %vm220 = vcmask 1041408
      %v222 = vsel %vm220, %v178, 0
      %224 = vmatprep.subr.mxu0 0.0
      %225 = vmatpush1.msra.mxu0 %v222
      %226 = vmatprep.subr.mxu0 0.0
      %227 = vmatpush1.msra.mxu0 0.0
      %228 = vmatprep.subr.mxu0 0.0
      %229 = vmatpush1.msra.mxu0 0.0
      %230 = vmatprep.subr.mxu0 0.0
      %231 = vmatpush1.msra.mxu0 0.0
      %232 = vmatprep.subr.mxu0 0.0
      %233 = vmatpush1.msra.mxu0 0.0
      %234 = vmatprep.subr.mxu0 0.0
      %235 = vmatpush1.msra.mxu0 0.0
      %236 = vmatprep.subr.mxu0 0.0
      %237 = vmatpush1.msra.mxu0 0.0
      %238 = vmatprep.subr.mxu0 0.0
      %239 = vmatpush1.msra.mxu0 0.0
      %240 = vmatprep.subr.mxu0 0.0
      %241 = vmatpush1.msra.mxu0 0.0
      %242 = vmatprep.subr.mxu0 0.0
      %243 = vmatpush1.msra.mxu0 0.0
      %244 = vmatprep.subr.mxu0 0.0
      %245 = vmatpush1.msra.mxu0 0.0
      %246 = vmatprep.subr.mxu0 0.0
      %247 = vmatpush1.msra.mxu0 0.0
      %248 = vmatprep.subr.mxu0 0.0
      %249 = vmatpush1.msra.mxu0 0.0
      %250 = vmatprep.subr.mxu0 0.0
      %251 = vmatpush1.msra.mxu0 0.0
      %252 = vmatprep.subr.mxu0 0.0
      %253 = vmatpush1.msra.mxu0 0.0
      %254 = vmatprep.subr.mxu0 0.0
      %255 = vmatpush1.msra.mxu0 0.0
      %256 = vmatprep.subr.mxu0 0.0
      %257 = vmatpush1.msra.mxu0 0.0
      %258 = vmatprep.subr.mxu0 0.0
      %259 = vmatpush1.msra.mxu0 0.0
      %260 = vmatprep.subr.mxu0 0.0
      %261 = vmatpush1.msra.mxu0 0.0
      %262 = vmatprep.subr.mxu0 0.0
      %263 = vmatpush1.msra.mxu0 0.0
      %264 = vmatprep.subr.mxu0 0.0
      %265 = vmatpush1.msra.mxu0 0.0
      %266 = vmatprep.subr.mxu0 0.0
      %267 = vmatpush1.msra.mxu0 0.0
      %268 = vmatprep.subr.mxu0 0.0
      %269 = vmatpush1.msra.mxu0 0.0
      %270 = vmatprep.subr.mxu0 0.0
      %271 = vmatpush1.msra.mxu0 0.0
      %272 = vmatprep.subr.mxu0 0.0
      %273 = vmatpush1.msra.mxu0 0.0
      %274 = vmatprep.subr.mxu0 0.0
      %275 = vmatpush1.msra.mxu0 0.0
      %276 = vmatprep.subr.mxu0 0.0
      %277 = vmatpush1.msra.mxu0 0.0
      %278 = vmatprep.subr.mxu0 0.0
      %279 = vmatpush1.msra.mxu0 0.0
      %280 = vmatprep.subr.mxu0 0.0
      %281 = vmatpush1.msra.mxu0 0.0
      %282 = vmatprep.subr.mxu0 0.0
      %283 = vmatpush1.msra.mxu0 0.0
      %284 = vmatprep.subr.mxu0 0.0
      %285 = vmatpush1.msra.mxu0 0.0
      %286 = vmatprep.subr.mxu0 0.0
      %287 = vmatpush1.msra.mxu0 0.0
      %288 = vmatprep.mubr.f32.mxu0 0.0
      %289 = vmatmul.mubr.f32.gmra.mrb[0].mxu0 %v209
      %v290 = vpop.f32.mrb[0].mxu0
      %v291 = vadd.f32 %v190, %v290
      %v292 = vpop.f32.mrb[0].mxu0
      %293 = vmatprep.mubr.f32.mxu0 0.0
      %294 = vmatmul.mubr.f32.gmra.mrb[0].mxu0 %v212
      %v295 = vpop.f32.mrb[0].mxu0
      %v296 = vadd.f32 %v195, %v295
      %v297 = vpop.f32.mrb[0].mxu0
      %298 = vmatprep.mubr.f32.mxu0 0.0
      %299 = vmatmul.mubr.f32.gmra.mrb[0].mxu0 %v215
      %v300 = vpop.f32.mrb[0].mxu0
      %v301 = vadd.f32 %v200, %v300
      %v302 = vpop.f32.mrb[0].mxu0
      %303 = vmatprep.mubr.f32.mxu0 0.0
      %304 = vmatmul.mubr.f32.gmra.mrb[0].mxu0 %v218
      %v305 = vpop.f32.mrb[0].mxu0
      %v306 = vadd.f32 %v205, %v305
      %v307 = vpop.f32.mrb[0].mxu0
      %308 = vdwg.mxu0
      %v309 = vld [vmem:[%s6] sm:$0xff]
      %v310 = vld [vmem:[%s7] sm:$0xff]
      %312 = vset.pattern.permute.xlu0 0
      %313 = vperm.xlu0 %312, %v310
      %v314 = vpop.permute.xlu0 %313
      %v317 = vsel %vm104, %v309, 0
      %319 = vmatprep.subr.mxu0 %v74
      %320 = vmatpush1.msra.mxu0 %v73
      %321 = vmatprep.subr.mxu0 %v76
      %322 = vmatpush1.msra.mxu0 %v75
      %323 = vmatprep.subr.mxu0 %v78
      %324 = vmatpush1.msra.mxu0 %v77
      %325 = vmatprep.subr.mxu0 %v80
      %326 = vmatpush1.msra.mxu0 %v79
      %327 = vmatprep.subr.mxu0 0.0
      %328 = vmatpush1.msra.mxu0 0.0
      %329 = vmatprep.subr.mxu0 0.0
      %330 = vmatpush1.msra.mxu0 0.0
      %331 = vmatprep.subr.mxu0 0.0
      %332 = vmatpush1.msra.mxu0 0.0
      %333 = vmatprep.subr.mxu0 0.0
      %334 = vmatpush1.msra.mxu0 0.0
      %335 = vmatprep.subr.mxu0 0.0
      %336 = vmatpush1.msra.mxu0 0.0
      %337 = vmatprep.subr.mxu0 0.0
      %338 = vmatpush1.msra.mxu0 0.0
      %339 = vmatprep.subr.mxu0 0.0
      %340 = vmatpush1.msra.mxu0 0.0
      %341 = vmatprep.subr.mxu0 0.0
      %342 = vmatpush1.msra.mxu0 0.0
      %343 = vmatprep.subr.mxu0 0.0
      %344 = vmatpush1.msra.mxu0 0.0
      %345 = vmatprep.subr.mxu0 0.0
      %346 = vmatpush1.msra.mxu0 0.0
      %347 = vmatprep.subr.mxu0 0.0
      %348 = vmatpush1.msra.mxu0 0.0
      %349 = vmatprep.subr.mxu0 0.0
      %350 = vmatpush1.msra.mxu0 0.0
      %351 = vmatprep.subr.mxu0 0.0
      %352 = vmatpush1.msra.mxu0 0.0
      %353 = vmatprep.subr.mxu0 0.0
      %354 = vmatpush1.msra.mxu0 0.0
      %355 = vmatprep.subr.mxu0 0.0
      %356 = vmatpush1.msra.mxu0 0.0
      %357 = vmatprep.subr.mxu0 0.0
      %358 = vmatpush1.msra.mxu0 0.0
      %359 = vmatprep.subr.mxu0 0.0
      %360 = vmatpush1.msra.mxu0 0.0
      %361 = vmatprep.subr.mxu0 0.0
      %362 = vmatpush1.msra.mxu0 0.0
      %363 = vmatprep.subr.mxu0 0.0
      %364 = vmatpush1.msra.mxu0 0.0
      %365 = vmatprep.subr.mxu0 0.0
      %366 = vmatpush1.msra.mxu0 0.0
      %367 = vmatprep.subr.mxu0 0.0
      %368 = vmatpush1.msra.mxu0 0.0
      %369 = vmatprep.subr.mxu0 0.0
      %370 = vmatpush1.msra.mxu0 0.0
      %371 = vmatprep.subr.mxu0 0.0
      %372 = vmatpush1.msra.mxu0 0.0
      %373 = vmatprep.subr.mxu0 0.0
      %374 = vmatpush1.msra.mxu0 0.0
      %375 = vmatprep.subr.mxu0 0.0
      %376 = vmatpush1.msra.mxu0 0.0
      %377 = vmatprep.subr.mxu0 0.0
      %378 = vmatpush1.msra.mxu0 0.0
      %379 = vmatprep.subr.mxu0 0.0
      %380 = vmatpush1.msra.mxu0 0.0
      %381 = vmatprep.subr.mxu0 0.0
      %382 = vmatpush1.msra.mxu0 0.0
      %383 = vmatprep.mubr.f32.mxu0 0.0
      %384 = vmatmul.mubr.f32.gmra.mrb[0].mxu0 %v317
      %v385 = vpop.f32.mrb[0].mxu0
      %v386 = vadd.f32 %v314, %v385
      %v387 = vpop.f32.mrb[0].mxu0
      %v388 = vadd.f32 %v314, %v387
      %389 = vdwg.mxu0
      %390 = vrot.lane.b32.xlu0 %v386, 68
      %v391 = vpop.permute.xlu0 %390
      %392 = vrot.lane.b32.xlu0 %v388, 68
      %v393 = vpop.permute.xlu0 %392
      %v394 = vlaneseq
      %v395 = vand.u32 %v394, 127
      %vm396 = vcmp.lt.s32.totalorder %v395, 68
      %v397 = vsel %vm396, %v391, %v393
      %v398 = vsel %vm396, %v393, %v391
      %v399 = vld [vmem:[%s1] ss:$8 sm:$0x3]
      %v401 = vlaneseq
      %v402 = vshrl.u32 %v401, 7
      %v403 = vsub.s32 0, %v402
      %v404 = vrot.slane %v399, %v403
      %v405 = vlaneseq
      %v406 = vshrl.u32 %v405, 7
      %v407 = vsub.s32 1, %v406
      %v408 = vrot.slane %v399, %v407
      %v411 = vmul.f32 %v398, %v404
      %v412 = vmul.f32 %v397, %v408
      %413 = vst [vmem:[#allocation2] sm:$0xff] %v411
      %414 = vst [vmem:[#allocation2 + $0x8] sm:$0xff] %v412
      %415 = vrot.lane.b32.xlu0 %v386, 64
      %v416 = vpop.permute.xlu0 %415
      %417 = vrot.lane.b32.xlu0 %v388, 64
      %v418 = vpop.permute.xlu0 %417
      %vm419 = vcmp.lt.s32.totalorder %v395, 64
      %v420 = vsel %vm419, %v416, %v418
      %v421 = vsel %vm419, %v418, %v416
      %s422 = scalar_lea.vmem %s1, 1
      %v423 = vld [vmem:[%s422] ss:$8 sm:$0x3]
      %v425 = vlaneseq
      %v426 = vshrl.u32 %v425, 7
      %v427 = vsub.s32 0, %v426
      %v428 = vrot.slane %v423, %v427
      %v429 = vlaneseq
      %v430 = vshrl.u32 %v429, 7
      %v431 = vsub.s32 1, %v430
      %v432 = vrot.slane %v423, %v431
      %v435 = vmul.f32 %v421, %v428
      %v436 = vmul.f32 %v420, %v432
      %437 = vst [vmem:[#allocation2 + $0x10] sm:$0xff] %v435
      %438 = vst [vmem:[#allocation2 + $0x18] sm:$0xff] %v436
      %439 = vrot.lane.b32.xlu0 %v386, 60
      %v440 = vpop.permute.xlu0 %439
      %441 = vrot.lane.b32.xlu0 %v388, 60
      %v442 = vpop.permute.xlu0 %441
      %vm443 = vcmp.lt.s32.totalorder %v395, 60
      %v444 = vsel %vm443, %v440, %v442
      %v445 = vsel %vm443, %v442, %v440
      %s446 = scalar_lea.vmem %s1, 2
      %v447 = vld [vmem:[%s446] ss:$8 sm:$0x3]
      %v449 = vlaneseq
      %v450 = vshrl.u32 %v449, 7
      %v451 = vsub.s32 0, %v450
      %v452 = vrot.slane %v447, %v451
      %v453 = vlaneseq
      %v454 = vshrl.u32 %v453, 7
      %v455 = vsub.s32 1, %v454
      %v456 = vrot.slane %v447, %v455
      %v459 = vmul.f32 %v445, %v452
      %v460 = vmul.f32 %v444, %v456
      %461 = vst [vmem:[#allocation2 + $0x20] sm:$0xff] %v459
      %462 = vst [vmem:[#allocation2 + $0x28] sm:$0xff] %v460
      %463 = vrot.lane.b32.xlu0 %v386, 4
      %v464 = vpop.permute.xlu0 %463
      %465 = vrot.lane.b32.xlu0 %v388, 4
      %v466 = vpop.permute.xlu0 %465
      %vm467 = vcmp.lt.s32.totalorder %v395, 4
      %v468 = vsel %vm467, %v464, %v466
      %v469 = vsel %vm467, %v466, %v464
      %s470 = scalar_lea.vmem %s1, 3
      %v471 = vld [vmem:[%s470] ss:$8 sm:$0x3]
      %v473 = vlaneseq
      %v474 = vshrl.u32 %v473, 7
      %v475 = vsub.s32 0, %v474
      %v476 = vrot.slane %v471, %v475
      %v477 = vlaneseq
      %v478 = vshrl.u32 %v477, 7
      %v479 = vsub.s32 1, %v478
      %v480 = vrot.slane %v471, %v479
      %v483 = vmul.f32 %v469, %v476
      %v484 = vmul.f32 %v468, %v480
      %485 = vst [vmem:[#allocation2 + $0x30] sm:$0xff] %v483
      %486 = vst [vmem:[#allocation2 + $0x38] sm:$0xff] %v484
      %s487 = scalar_lea.vmem %s1, 4
      %v488 = vld [vmem:[%s487] ss:$8 sm:$0x3]
      %v490 = vlaneseq
      %v491 = vshrl.u32 %v490, 7
      %v492 = vsub.s32 0, %v491
      %v493 = vrot.slane %v488, %v492
      %v494 = vlaneseq
      %v495 = vshrl.u32 %v494, 7
      %v496 = vsub.s32 1, %v495
      %v497 = vrot.slane %v488, %v496
      %v500 = vmul.f32 %v386, %v493
      %v501 = vmul.f32 %v388, %v497
      %502 = vst [vmem:[#allocation2 + $0x40] sm:$0xff] %v500
      %503 = vst [vmem:[#allocation2 + $0x48] sm:$0xff] %v501
      %504 = vrot.lane.b32.xlu0 %v386, 124
      %v505 = vpop.permute.xlu0 %504
      %506 = vrot.lane.b32.xlu0 %v388, 124
      %v507 = vpop.permute.xlu0 %506
      %vm508 = vcmp.lt.s32.totalorder %v395, 124
      %v509 = vsel %vm508, %v505, %v507
      %v510 = vsel %vm508, %v507, %v505
      %s511 = scalar_lea.vmem %s1, 5
      %v512 = vld [vmem:[%s511] ss:$8 sm:$0x3]
      %v514 = vlaneseq
      %v515 = vshrl.u32 %v514, 7
      %v516 = vsub.s32 0, %v515
      %v517 = vrot.slane %v512, %v516
      %v518 = vlaneseq
      %v519 = vshrl.u32 %v518, 7
      %v520 = vsub.s32 1, %v519
      %v521 = vrot.slane %v512, %v520
      %v524 = vmul.f32 %v509, %v517
      %v525 = vmul.f32 %v510, %v521
      %526 = vst [vmem:[#allocation2 + $0x50] sm:$0xff] %v524
      %527 = vst [vmem:[#allocation2 + $0x58] sm:$0xff] %v525
      %s528 = scalar_lea.vmem %s1, 6
      %v529 = vld [vmem:[%s528] ss:$8 sm:$0x3]
      %v531 = vlaneseq
      %v532 = vshrl.u32 %v531, 7
      %v533 = vsub.s32 0, %v532
      %v534 = vrot.slane %v529, %v533
      %v535 = vlaneseq
      %v536 = vshrl.u32 %v535, 7
      %v537 = vsub.s32 1, %v536
      %v538 = vrot.slane %v529, %v537
      %v541 = vmul.f32 %v397, %v534
      %v542 = vmul.f32 %v398, %v538
      %543 = vst [vmem:[#allocation2 + $0x60] sm:$0xff] %v541
      %544 = vst [vmem:[#allocation2 + $0x68] sm:$0xff] %v542
      %s545 = scalar_lea.vmem %s1, 7
      %v546 = vld [vmem:[%s545] ss:$8 sm:$0x3]
      %v548 = vlaneseq
      %v549 = vshrl.u32 %v548, 7
      %v550 = vsub.s32 0, %v549
      %v551 = vrot.slane %v546, %v550
      %v552 = vlaneseq
      %v553 = vshrl.u32 %v552, 7
      %v554 = vsub.s32 1, %v553
      %v555 = vrot.slane %v546, %v554
      %v558 = vmul.f32 %v420, %v551
      %v559 = vmul.f32 %v421, %v555
      %560 = vst [vmem:[#allocation2 + $0x70] sm:$0xff] %v558
      %561 = vst [vmem:[#allocation2 + $0x78] sm:$0xff] %v559
      %s562 = scalar_lea.vmem %s1, 16
      %v563 = vld [vmem:[%s562] ss:$8 sm:$0x3]
      %v565 = vlaneseq
      %v566 = vshrl.u32 %v565, 7
      %v567 = vsub.s32 0, %v566
      %v568 = vrot.slane %v563, %v567
      %v569 = vlaneseq
      %v570 = vshrl.u32 %v569, 7
      %v571 = vsub.s32 1, %v570
      %v572 = vrot.slane %v563, %v571
      %v575 = vmul.f32 %v444, %v568
      %v576 = vmul.f32 %v445, %v572
      %577 = vst [vmem:[#allocation2 + $0x80] sm:$0xff] %v575
      %578 = vst [vmem:[#allocation2 + $0x88] sm:$0xff] %v576
      %v579 = vld [vmem:[%s8] sm:$0xff]
      %v580 = vld [vmem:[#allocation2] sm:$0xff]
      %v581 = vld [vmem:[#allocation2 + $0x8] sm:$0xff]
      %v582 = vld [vmem:[#allocation2 + $0x10] sm:$0xff]
      %v583 = vld [vmem:[#allocation2 + $0x18] sm:$0xff]
      %v584 = vld [vmem:[#allocation2 + $0x20] sm:$0xff]
      %v585 = vld [vmem:[#allocation2 + $0x28] sm:$0xff]
      %v586 = vld [vmem:[#allocation2 + $0x30] sm:$0xff]
      %v587 = vld [vmem:[#allocation2 + $0x38] sm:$0xff]
      %v588 = vld [vmem:[#allocation2 + $0x40] sm:$0xff]
      %v589 = vld [vmem:[#allocation2 + $0x48] sm:$0xff]
      %v590 = vld [vmem:[#allocation2 + $0x50] sm:$0xff]
      %v591 = vld [vmem:[#allocation2 + $0x58] sm:$0xff]
      %v592 = vld [vmem:[#allocation2 + $0x60] sm:$0xff]
      %v593 = vld [vmem:[#allocation2 + $0x68] sm:$0xff]
      %v594 = vld [vmem:[#allocation2 + $0x70] sm:$0xff]
      %v595 = vld [vmem:[#allocation2 + $0x78] sm:$0xff]
      %v596 = vld [vmem:[#allocation2 + $0x80] sm:$0xff]
      %v597 = vld [vmem:[#allocation2 + $0x88] sm:$0xff]
      %v598 = vld [vmem:[%s9] sm:$0xff]
      %600 = vset.pattern.permute.xlu0 0
      %601 = vperm.xlu0 %600, %v598
      %v602 = vpop.permute.xlu0 %601
      %vm604 = vcmask 588800
      %v606 = vsel %vm604, %v579, 0
      %608 = vmatprep.subr.mxu0 %v581
      %609 = vmatpush1.msra.mxu0 %v580
      %610 = vmatprep.subr.mxu0 %v583
      %611 = vmatpush1.msra.mxu0 %v582
      %612 = vmatprep.subr.mxu0 %v585
      %613 = vmatpush1.msra.mxu0 %v584
      %614 = vmatprep.subr.mxu0 %v587
      %615 = vmatpush1.msra.mxu0 %v586
      %616 = vmatprep.subr.mxu0 %v589
      %617 = vmatpush1.msra.mxu0 %v588
      %618 = vmatprep.subr.mxu0 %v591
      %619 = vmatpush1.msra.mxu0 %v590
      %620 = vmatprep.subr.mxu0 %v593
      %621 = vmatpush1.msra.mxu0 %v592
      %622 = vmatprep.subr.mxu0 %v595
      %623 = vmatpush1.msra.mxu0 %v594
      %624 = vmatprep.subr.mxu0 %v597
      %625 = vmatpush1.msra.mxu0 %v596
      %626 = vmatprep.subr.mxu0 0.0
      %627 = vmatpush1.msra.mxu0 0.0
      %628 = vmatprep.subr.mxu0 0.0
      %629 = vmatpush1.msra.mxu0 0.0
      %630 = vmatprep.subr.mxu0 0.0
      %631 = vmatpush1.msra.mxu0 0.0
      %632 = vmatprep.subr.mxu0 0.0
      %633 = vmatpush1.msra.mxu0 0.0
      %634 = vmatprep.subr.mxu0 0.0
      %635 = vmatpush1.msra.mxu0 0.0
      %636 = vmatprep.subr.mxu0 0.0
      %637 = vmatpush1.msra.mxu0 0.0
      %638 = vmatprep.subr.mxu0 0.0
      %639 = vmatpush1.msra.mxu0 0.0
      %640 = vmatprep.subr.mxu0 0.0
      %641 = vmatpush1.msra.mxu0 0.0
      %642 = vmatprep.subr.mxu0 0.0
      %643 = vmatpush1.msra.mxu0 0.0
      %644 = vmatprep.subr.mxu0 0.0
      %645 = vmatpush1.msra.mxu0 0.0
      %646 = vmatprep.subr.mxu0 0.0
      %647 = vmatpush1.msra.mxu0 0.0
      %648 = vmatprep.subr.mxu0 0.0
      %649 = vmatpush1.msra.mxu0 0.0
      %650 = vmatprep.subr.mxu0 0.0
      %651 = vmatpush1.msra.mxu0 0.0
      %652 = vmatprep.subr.mxu0 0.0
      %653 = vmatpush1.msra.mxu0 0.0
      %654 = vmatprep.subr.mxu0 0.0
      %655 = vmatpush1.msra.mxu0 0.0
      %656 = vmatprep.subr.mxu0 0.0
      %657 = vmatpush1.msra.mxu0 0.0
      %658 = vmatprep.subr.mxu0 0.0
      %659 = vmatpush1.msra.mxu0 0.0
      %660 = vmatprep.subr.mxu0 0.0
      %661 = vmatpush1.msra.mxu0 0.0
      %662 = vmatprep.subr.mxu0 0.0
      %663 = vmatpush1.msra.mxu0 0.0
      %664 = vmatprep.subr.mxu0 0.0
      %665 = vmatpush1.msra.mxu0 0.0
      %666 = vmatprep.subr.mxu0 0.0
      %667 = vmatpush1.msra.mxu0 0.0
      %668 = vmatprep.subr.mxu0 0.0
      %669 = vmatpush1.msra.mxu0 0.0
      %670 = vmatprep.subr.mxu0 0.0
      %671 = vmatpush1.msra.mxu0 0.0
      %672 = vmatprep.mubr.f32.mxu0 0.0
      %673 = vmatmul.mubr.f32.gmra.mrb[0].mxu0 %v606
      %v674 = vpop.f32.mrb[0].mxu0
      %v675 = vadd.f32 %v602, %v674
      %v676 = vpop.f32.mrb[0].mxu0
      %v677 = vadd.f32 %v602, %v676
      %678 = vdwg.mxu0
      %v679 = vmax.f32 %v675, 0.0
      %v680 = vmax.f32 %v677, 0.0
      %681 = vrot.lane.b32.xlu0 %v679, 68
      %v682 = vpop.permute.xlu0 %681
      %683 = vrot.lane.b32.xlu0 %v680, 68
      %v684 = vpop.permute.xlu0 %683
      %v685 = vsel %vm396, %v682, %v684
      %v686 = vsel %vm396, %v684, %v682
      %v687 = vld [vmem:[%s1] ss:$8 sm:$0x3]
      %v689 = vlaneseq
      %v690 = vshrl.u32 %v689, 7
      %v691 = vsub.s32 0, %v690
      %v692 = vrot.slane %v687, %v691
      %v693 = vlaneseq
      %v694 = vshrl.u32 %v693, 7
      %v695 = vsub.s32 1, %v694
      %v696 = vrot.slane %v687, %v695
      %v699 = vmul.f32 %v686, %v692
      %v700 = vmul.f32 %v685, %v696
      %701 = vst [vmem:[#allocation2] sm:$0xff] %v699
      %702 = vst [vmem:[#allocation2 + $0x8] sm:$0xff] %v700
      %703 = vrot.lane.b32.xlu0 %v679, 64
      %v704 = vpop.permute.xlu0 %703
      %705 = vrot.lane.b32.xlu0 %v680, 64
      %v706 = vpop.permute.xlu0 %705
      %v707 = vsel %vm419, %v704, %v706
      %v708 = vsel %vm419, %v706, %v704
      %v709 = vld [vmem:[%s422] ss:$8 sm:$0x3]
      %v711 = vlaneseq
      %v712 = vshrl.u32 %v711, 7
      %v713 = vsub.s32 0, %v712
      %v714 = vrot.slane %v709, %v713
      %v715 = vlaneseq
      %v716 = vshrl.u32 %v715, 7
      %v717 = vsub.s32 1, %v716
      %v718 = vrot.slane %v709, %v717
      %v721 = vmul.f32 %v708, %v714
      %v722 = vmul.f32 %v707, %v718
      %723 = vst [vmem:[#allocation2 + $0x10] sm:$0xff] %v721
      %724 = vst [vmem:[#allocation2 + $0x18] sm:$0xff] %v722
      %725 = vrot.lane.b32.xlu0 %v679, 60
      %v726 = vpop.permute.xlu0 %725
      %727 = vrot.lane.b32.xlu0 %v680, 60
      %v728 = vpop.permute.xlu0 %727
      %v729 = vsel %vm443, %v726, %v728
      %v730 = vsel %vm443, %v728, %v726
      %v731 = vld [vmem:[%s446] ss:$8 sm:$0x3]
      %v733 = vlaneseq
      %v734 = vshrl.u32 %v733, 7
      %v735 = vsub.s32 0, %v734
      %v736 = vrot.slane %v731, %v735
      %v737 = vlaneseq
      %v738 = vshrl.u32 %v737, 7
      %v739 = vsub.s32 1, %v738
      %v740 = vrot.slane %v731, %v739
      %v743 = vmul.f32 %v730, %v736
      %v744 = vmul.f32 %v729, %v740
      %745 = vst [vmem:[#allocation2 + $0x20] sm:$0xff] %v743
      %746 = vst [vmem:[#allocation2 + $0x28] sm:$0xff] %v744
      %747 = vrot.lane.b32.xlu0 %v679, 4
      %v748 = vpop.permute.xlu0 %747
      %749 = vrot.lane.b32.xlu0 %v680, 4
      %v750 = vpop.permute.xlu0 %749
      %v751 = vsel %vm467, %v748, %v750
      %v752 = vsel %vm467, %v750, %v748
      %v753 = vld [vmem:[%s470] ss:$8 sm:$0x3]
      %v755 = vlaneseq
      %v756 = vshrl.u32 %v755, 7
      %v757 = vsub.s32 0, %v756
      %v758 = vrot.slane %v753, %v757
      %v759 = vlaneseq
      %v760 = vshrl.u32 %v759, 7
      %v761 = vsub.s32 1, %v760
      %v762 = vrot.slane %v753, %v761
      %v765 = vmul.f32 %v752, %v758
      %v766 = vmul.f32 %v751, %v762
      %767 = vst [vmem:[#allocation2 + $0x30] sm:$0xff] %v765
      %768 = vst [vmem:[#allocation2 + $0x38] sm:$0xff] %v766
      %v769 = vld [vmem:[%s487] ss:$8 sm:$0x3]
      %v771 = vlaneseq
      %v772 = vshrl.u32 %v771, 7
      %v773 = vsub.s32 0, %v772
      %v774 = vrot.slane %v769, %v773
      %v775 = vlaneseq
      %v776 = vshrl.u32 %v775, 7
      %v777 = vsub.s32 1, %v776
      %v778 = vrot.slane %v769, %v777
      %v781 = vmul.f32 %v679, %v774
      %v782 = vmul.f32 %v680, %v778
      %783 = vst [vmem:[#allocation2 + $0x40] sm:$0xff] %v781
      %784 = vst [vmem:[#allocation2 + $0x48] sm:$0xff] %v782
      %785 = vrot.lane.b32.xlu0 %v679, 124
      %v786 = vpop.permute.xlu0 %785
      %787 = vrot.lane.b32.xlu0 %v680, 124
      %v788 = vpop.permute.xlu0 %787
      %v789 = vsel %vm508, %v786, %v788
      %v790 = vsel %vm508, %v788, %v786
      %v791 = vld [vmem:[%s511] ss:$8 sm:$0x3]
      %v793 = vlaneseq
      %v794 = vshrl.u32 %v793, 7
      %v795 = vsub.s32 0, %v794
      %v796 = vrot.slane %v791, %v795
      %v797 = vlaneseq
      %v798 = vshrl.u32 %v797, 7
      %v799 = vsub.s32 1, %v798
      %v800 = vrot.slane %v791, %v799
      %v803 = vmul.f32 %v789, %v796
      %v804 = vmul.f32 %v790, %v800
      %805 = vst [vmem:[#allocation2 + $0x50] sm:$0xff] %v803
      %806 = vst [vmem:[#allocation2 + $0x58] sm:$0xff] %v804
      %v807 = vld [vmem:[%s528] ss:$8 sm:$0x3]
      %v809 = vlaneseq
      %v810 = vshrl.u32 %v809, 7
      %v811 = vsub.s32 0, %v810
      %v812 = vrot.slane %v807, %v811
      %v813 = vlaneseq
      %v814 = vshrl.u32 %v813, 7
      %v815 = vsub.s32 1, %v814
      %v816 = vrot.slane %v807, %v815
      %v819 = vmul.f32 %v685, %v812
      %v820 = vmul.f32 %v686, %v816
      %821 = vst [vmem:[#allocation2 + $0x60] sm:$0xff] %v819
      %822 = vst [vmem:[#allocation2 + $0x68] sm:$0xff] %v820
      %v823 = vld [vmem:[%s545] ss:$8 sm:$0x3]
      %v825 = vlaneseq
      %v826 = vshrl.u32 %v825, 7
      %v827 = vsub.s32 0, %v826
      %v828 = vrot.slane %v823, %v827
      %v829 = vlaneseq
      %v830 = vshrl.u32 %v829, 7
      %v831 = vsub.s32 1, %v830
      %v832 = vrot.slane %v823, %v831
      %v835 = vmul.f32 %v707, %v828
      %v836 = vmul.f32 %v708, %v832
      %837 = vst [vmem:[#allocation2 + $0x70] sm:$0xff] %v835
      %838 = vst [vmem:[#allocation2 + $0x78] sm:$0xff] %v836
      %v839 = vld [vmem:[%s562] ss:$8 sm:$0x3]
      %v841 = vlaneseq
      %v842 = vshrl.u32 %v841, 7
      %v843 = vsub.s32 0, %v842
      %v844 = vrot.slane %v839, %v843
      %v845 = vlaneseq
      %v846 = vshrl.u32 %v845, 7
      %v847 = vsub.s32 1, %v846
      %v848 = vrot.slane %v839, %v847
      %v851 = vmul.f32 %v729, %v844
      %v852 = vmul.f32 %v730, %v848
      %853 = vst [vmem:[#allocation2 + $0x80] sm:$0xff] %v851
      %854 = vst [vmem:[#allocation2 + $0x88] sm:$0xff] %v852
      %v855 = vld [vmem:[%s10] sm:$0xff]
      %v856 = vld [vmem:[#allocation2] sm:$0xff]
      %v857 = vld [vmem:[#allocation2 + $0x8] sm:$0xff]
      %v858 = vld [vmem:[#allocation2 + $0x10] sm:$0xff]
      %v859 = vld [vmem:[#allocation2 + $0x18] sm:$0xff]
      %v860 = vld [vmem:[#allocation2 + $0x20] sm:$0xff]
      %v861 = vld [vmem:[#allocation2 + $0x28] sm:$0xff]
      %v862 = vld [vmem:[#allocation2 + $0x30] sm:$0xff]
      %v863 = vld [vmem:[#allocation2 + $0x38] sm:$0xff]
      %v864 = vld [vmem:[#allocation2 + $0x40] sm:$0xff]
      %v865 = vld [vmem:[#allocation2 + $0x48] sm:$0xff]
      %v866 = vld [vmem:[#allocation2 + $0x50] sm:$0xff]
      %v867 = vld [vmem:[#allocation2 + $0x58] sm:$0xff]
      %v868 = vld [vmem:[#allocation2 + $0x60] sm:$0xff]
      %v869 = vld [vmem:[#allocation2 + $0x68] sm:$0xff]
      %v870 = vld [vmem:[#allocation2 + $0x70] sm:$0xff]
      %v871 = vld [vmem:[#allocation2 + $0x78] sm:$0xff]
      %v872 = vld [vmem:[#allocation2 + $0x80] sm:$0xff]
      %v873 = vld [vmem:[#allocation2 + $0x88] sm:$0xff]
      %v874 = vld [vmem:[%s11] sm:$0xff]
      %876 = vset.pattern.permute.xlu0 0
      %877 = vperm.xlu0 %876, %v874
      %v878 = vpop.permute.xlu0 %877
      %v881 = vsel %vm604, %v855, 0
      %883 = vmatprep.subr.mxu0 %v857
      %884 = vmatpush1.msra.mxu0 %v856
      %885 = vmatprep.subr.mxu0 %v859
      %886 = vmatpush1.msra.mxu0 %v858
      %887 = vmatprep.subr.mxu0 %v861
      %888 = vmatpush1.msra.mxu0 %v860
      %889 = vmatprep.subr.mxu0 %v863
      %890 = vmatpush1.msra.mxu0 %v862
      %891 = vmatprep.subr.mxu0 %v865
      %892 = vmatpush1.msra.mxu0 %v864
      %893 = vmatprep.subr.mxu0 %v867
      %894 = vmatpush1.msra.mxu0 %v866
      %895 = vmatprep.subr.mxu0 %v869
      %896 = vmatpush1.msra.mxu0 %v868
      %897 = vmatprep.subr.mxu0 %v871
      %898 = vmatpush1.msra.mxu0 %v870
      %899 = vmatprep.subr.mxu0 %v873
      %900 = vmatpush1.msra.mxu0 %v872
      %901 = vmatprep.subr.mxu0 0.0
      %902 = vmatpush1.msra.mxu0 0.0
      %903 = vmatprep.subr.mxu0 0.0
      %904 = vmatpush1.msra.mxu0 0.0
      %905 = vmatprep.subr.mxu0 0.0
      %906 = vmatpush1.msra.mxu0 0.0
      %907 = vmatprep.subr.mxu0 0.0
      %908 = vmatpush1.msra.mxu0 0.0
      %909 = vmatprep.subr.mxu0 0.0
      %910 = vmatpush1.msra.mxu0 0.0
      %911 = vmatprep.subr.mxu0 0.0
      %912 = vmatpush1.msra.mxu0 0.0
      %913 = vmatprep.subr.mxu0 0.0
      %914 = vmatpush1.msra.mxu0 0.0
      %915 = vmatprep.subr.mxu0 0.0
      %916 = vmatpush1.msra.mxu0 0.0
      %917 = vmatprep.subr.mxu0 0.0
      %918 = vmatpush1.msra.mxu0 0.0
      %919 = vmatprep.subr.mxu0 0.0
      %920 = vmatpush1.msra.mxu0 0.0
      %921 = vmatprep.subr.mxu0 0.0
      %922 = vmatpush1.msra.mxu0 0.0
      %923 = vmatprep.subr.mxu0 0.0
      %924 = vmatpush1.msra.mxu0 0.0
      %925 = vmatprep.subr.mxu0 0.0
      %926 = vmatpush1.msra.mxu0 0.0
      %927 = vmatprep.subr.mxu0 0.0
      %928 = vmatpush1.msra.mxu0 0.0
      %929 = vmatprep.subr.mxu0 0.0
      %930 = vmatpush1.msra.mxu0 0.0
      %931 = vmatprep.subr.mxu0 0.0
      %932 = vmatpush1.msra.mxu0 0.0
      %933 = vmatprep.subr.mxu0 0.0
      %934 = vmatpush1.msra.mxu0 0.0
      %935 = vmatprep.subr.mxu0 0.0
      %936 = vmatpush1.msra.mxu0 0.0
      %937 = vmatprep.subr.mxu0 0.0
      %938 = vmatpush1.msra.mxu0 0.0
      %939 = vmatprep.subr.mxu0 0.0
      %940 = vmatpush1.msra.mxu0 0.0
      %941 = vmatprep.subr.mxu0 0.0
      %942 = vmatpush1.msra.mxu0 0.0
      %943 = vmatprep.subr.mxu0 0.0
      %944 = vmatpush1.msra.mxu0 0.0
      %945 = vmatprep.subr.mxu0 0.0
      %946 = vmatpush1.msra.mxu0 0.0
      %947 = vmatprep.mubr.f32.mxu0 0.0
      %948 = vmatmul.mubr.f32.gmra.mrb[0].mxu0 %v881
      %v949 = vpop.f32.mrb[0].mxu0
      %v950 = vadd.f32 %v878, %v949
      %v951 = vpop.f32.mrb[0].mxu0
      %v952 = vadd.f32 %v878, %v951
      %953 = vdwg.mxu0
      %v954 = vmax.f32 %v950, 0.0
      %v955 = vmax.f32 %v952, 0.0
      %v956 = vld [vmem:[%s12] sm:$0x1]
      %v957 = vld [vmem:[#allocation3] sm:$0x1]
      %959 = vset.pattern.permute.xlu0 0
      %960 = vperm.xlu0 %959, %v957
      %v961 = vpop.permute.xlu0 %960
      %v963 = vlaneseq
      %v964 = vshrl.u32 %v963, 7
      %v965 = vsub.s32 0, %v964
      %v966 = vrot.slane %v961, %v965
      %vm967 = vcmask 64512
      %v969 = vsel %vm967, %v956, 0
      %971 = vmatprep.subr.mxu0 %v955
      %972 = vmatpush1.msra.mxu0 %v954
      %973 = vmatprep.subr.mxu0 0.0
      %974 = vmatpush1.msra.mxu0 0.0
      %975 = vmatprep.subr.mxu0 0.0
      %976 = vmatpush1.msra.mxu0 0.0
      %977 = vmatprep.subr.mxu0 0.0
      %978 = vmatpush1.msra.mxu0 0.0
      %979 = vmatprep.subr.mxu0 0.0
      %980 = vmatpush1.msra.mxu0 0.0
      %981 = vmatprep.subr.mxu0 0.0
      %982 = vmatpush1.msra.mxu0 0.0
      %983 = vmatprep.subr.mxu0 0.0
      %984 = vmatpush1.msra.mxu0 0.0
      %985 = vmatprep.subr.mxu0 0.0
      %986 = vmatpush1.msra.mxu0 0.0
      %987 = vmatprep.subr.mxu0 0.0
      %988 = vmatpush1.msra.mxu0 0.0
      %989 = vmatprep.subr.mxu0 0.0
      %990 = vmatpush1.msra.mxu0 0.0
      %991 = vmatprep.subr.mxu0 0.0
      %992 = vmatpush1.msra.mxu0 0.0
      %993 = vmatprep.subr.mxu0 0.0
      %994 = vmatpush1.msra.mxu0 0.0
      %995 = vmatprep.subr.mxu0 0.0
      %996 = vmatpush1.msra.mxu0 0.0
      %997 = vmatprep.subr.mxu0 0.0
      %998 = vmatpush1.msra.mxu0 0.0
      %999 = vmatprep.subr.mxu0 0.0
      %1000 = vmatpush1.msra.mxu0 0.0
      %1001 = vmatprep.subr.mxu0 0.0
      %1002 = vmatpush1.msra.mxu0 0.0
      %1003 = vmatprep.subr.mxu0 0.0
      %1004 = vmatpush1.msra.mxu0 0.0
      %1005 = vmatprep.subr.mxu0 0.0
      %1006 = vmatpush1.msra.mxu0 0.0
      %1007 = vmatprep.subr.mxu0 0.0
      %1008 = vmatpush1.msra.mxu0 0.0
      %1009 = vmatprep.subr.mxu0 0.0
      %1010 = vmatpush1.msra.mxu0 0.0
      %1011 = vmatprep.subr.mxu0 0.0
      %1012 = vmatpush1.msra.mxu0 0.0
      %1013 = vmatprep.subr.mxu0 0.0
      %1014 = vmatpush1.msra.mxu0 0.0
      %1015 = vmatprep.subr.mxu0 0.0
      %1016 = vmatpush1.msra.mxu0 0.0
      %1017 = vmatprep.subr.mxu0 0.0
      %1018 = vmatpush1.msra.mxu0 0.0
      %1019 = vmatprep.subr.mxu0 0.0
      %1020 = vmatpush1.msra.mxu0 0.0
      %1021 = vmatprep.subr.mxu0 0.0
      %1022 = vmatpush1.msra.mxu0 0.0
      %1023 = vmatprep.subr.mxu0 0.0
      %1024 = vmatpush1.msra.mxu0 0.0
      %1025 = vmatprep.subr.mxu0 0.0
      %1026 = vmatpush1.msra.mxu0 0.0
      %1027 = vmatprep.subr.mxu0 0.0
      %1028 = vmatpush1.msra.mxu0 0.0
      %1029 = vmatprep.subr.mxu0 0.0
      %1030 = vmatpush1.msra.mxu0 0.0
      %1031 = vmatprep.subr.mxu0 0.0
      %1032 = vmatpush1.msra.mxu0 0.0
      %1033 = vmatprep.subr.mxu0 0.0
      %1034 = vmatpush1.msra.mxu0 0.0
      %1035 = vmatprep.mubr.f32.mxu0 0.0
      %1036 = vmatmul.mubr.f32.gmra.mrb[0].mxu0 %v969
      %v1037 = vpop.f32.mrb[0].mxu0
      %v1038 = vadd.f32 %v966, %v1037
      %v1039 = vpop.f32.mrb[0].mxu0
      %v1040 = vadd.f32 %v966, %v1039
      %1041 = vdwg.mxu0
      %1043 = vset.pattern.permute.xlu0 0
      %1044 = vperm.xlu0 %1043, %v291
      %v1045 = vpop.permute.xlu0 %1044
      %1048 = vset.pattern.permute.xlu0 0
      %1049 = vperm.xlu0 %1048, %v296
      %v1050 = vpop.permute.xlu0 %1049
      %1053 = vset.pattern.permute.xlu0 0
      %1054 = vperm.xlu0 %1053, %v301
      %v1055 = vpop.permute.xlu0 %1054
      %1058 = vset.pattern.permute.xlu0 0
      %1059 = vperm.xlu0 %1058, %v306
      %v1060 = vpop.permute.xlu0 %1059
      %v1062 = vlaneseq
      %v1063 = vshrl.u32 %v1062, 7
      %v1064 = vsub.s32 0, %v1063
      %v1065 = vrot.slane %v1038, %v1064
      %v1066 = vlaneseq
      %v1067 = vshrl.u32 %v1066, 7
      %v1068 = vsub.s32 0, %v1067
      %v1069 = vrot.slane %v1040, %v1068
      %v1070 = vadd.f32 %v1045, %v1065
      %v1071 = vadd.f32 %v1045, %v1069
      %v1072 = vadd.f32 %v1050, %v1065
      %v1073 = vadd.f32 %v1050, %v1069
      %v1074 = vadd.f32 %v1055, %v1065
      %v1075 = vadd.f32 %v1055, %v1069
      %v1076 = vadd.f32 %v1060, %v1065
      %v1077 = vadd.f32 %v1060, %v1069
      %v1078 = vxor.u32 %v1070, 2147483648
      %v1079 = vxor.u32 %v1071, 2147483648
      %v1080 = vxor.u32 %v1072, 2147483648
      %v1081 = vxor.u32 %v1073, 2147483648
      %v1082 = vxor.u32 %v1074, 2147483648
      %v1083 = vxor.u32 %v1075, 2147483648
      %v1084 = vxor.u32 %v1076, 2147483648
      %v1085 = vxor.u32 %v1077, 2147483648
      %v1086 = vmul.f32 %v1078, 1.442695
      %v1087 = vpow.pop %v1086
      %v1088 = vmul.f32 %v1079, 1.442695
      %v1089 = vpow.pop %v1088
      %v1090 = vmul.f32 %v1080, 1.442695
      %v1091 = vpow.pop %v1090
      %v1092 = vmul.f32 %v1081, 1.442695
      %v1093 = vpow.pop %v1092
      %v1094 = vmul.f32 %v1082, 1.442695
      %v1095 = vpow.pop %v1094
      %v1096 = vmul.f32 %v1083, 1.442695
      %v1097 = vpow.pop %v1096
      %v1098 = vmul.f32 %v1084, 1.442695
      %v1099 = vpow.pop %v1098
      %v1100 = vmul.f32 %v1085, 1.442695
      %v1101 = vpow.pop %v1100
      %v1102 = vadd.f32 %v1087, 1.0
      %v1103 = vadd.f32 %v1089, 1.0
      %v1104 = vadd.f32 %v1091, 1.0
      %v1105 = vadd.f32 %v1093, 1.0
      %v1106 = vadd.f32 %v1095, 1.0
      %v1107 = vadd.f32 %v1097, 1.0
      %v1108 = vadd.f32 %v1099, 1.0
      %v1109 = vadd.f32 %v1101, 1.0
      %v1110 = vrcp.pop %v1102
      %v1111 = vmul.f32 1.0, %v1110
      %v1112 = vrcp.pop %v1103
      %v1113 = vmul.f32 1.0, %v1112
      %v1114 = vrcp.pop %v1104
      %v1115 = vmul.f32 1.0, %v1114
      %v1116 = vrcp.pop %v1105
      %v1117 = vmul.f32 1.0, %v1116
      %v1118 = vrcp.pop %v1106
      %v1119 = vmul.f32 1.0, %v1118
      %v1120 = vrcp.pop %v1107
      %v1121 = vmul.f32 1.0, %v1120
      %v1122 = vrcp.pop %v1108
      %v1123 = vmul.f32 1.0, %v1122
      %v1124 = vrcp.pop %v1109
      %v1125 = vmul.f32 1.0, %v1124
      %v1126 = vadd.f32 %v1111, 1.0
      %v1127 = vadd.f32 %v1113, 1.0
      %v1128 = vadd.f32 %v1115, 1.0
      %v1129 = vadd.f32 %v1117, 1.0
      %v1130 = vadd.f32 %v1119, 1.0
      %v1131 = vadd.f32 %v1121, 1.0
      %v1132 = vadd.f32 %v1123, 1.0
      %v1133 = vadd.f32 %v1125, 1.0
      %v1134 = vmul.f32 %v73, %v1126
      %v1135 = vmul.f32 %v74, %v1127
      %v1136 = vmul.f32 %v75, %v1128
      %v1137 = vmul.f32 %v76, %v1129
      %v1138 = vmul.f32 %v77, %v1130
      %v1139 = vmul.f32 %v78, %v1131
      %v1140 = vmul.f32 %v79, %v1132
      %v1141 = vmul.f32 %v80, %v1133
      %s1142 = smul.addr %s70, 8
      %s1143 = scalar_lea.vmem [#allocation7], %s1142
      %1144 = vst [vmem:[%s1143] sm:$0xff] %v1134
      %1145 = vst [vmem:[%s1143 + $0x8] sm:$0xff] %v1135
      %1146 = vst [vmem:[%s1143 + $0x10] sm:$0xff] %v1136
      %1147 = vst [vmem:[%s1143 + $0x18] sm:$0xff] %v1137
      %1148 = vst [vmem:[%s1143 + $0x20] sm:$0xff] %v1138
      %1149 = vst [vmem:[%s1143 + $0x28] sm:$0xff] %v1139
      %1150 = vst [vmem:[%s1143 + $0x30] sm:$0xff] %v1140
      %1151 = vst [vmem:[%s1143 + $0x38] sm:$0xff] %v1141
    $region66: #{tpu_custom_call.1} parent=1 // loop_footer
      %s69 = sadd.s32 1, %s65
    $region67: #{tpu_custom_call.1} parent=1 // loop_footer_branch
      %64 = sbr.rel target = $region63
    $region68: #{tpu_custom_call.1} parent=1 // loop_exit
      _
    // Predicated region
    $region69: #{tpu_custom_call.1} parent=1 // pred_check
      _
    $region70: #{tpu_custom_call.1} parent=1 // pred_check_branch
      %1153 = sbr.rel (0) target = $region72
    $region71: #{tpu_custom_call.1} parent=1 // pred_region
      %s1155 = ssub.s32 2048, 2048
      %1156 = vsyncadd [#allocation6], %s1155
      %s1157 = sshll.u32 [#allocation7], 4
      %s1158 = int_to_ptr.vmem [resolvable:$true] %s1157
      %1163 = dma.vmem_to_hbm [thread:$0]  %s1158, 2048, %s14, [#allocation6], 256, 256, 16
    $region72: #{tpu_custom_call.1} parent=1 // pred_fallthru
      _
    // Predicated region
    $region73: #{tpu_custom_call.1} parent=1 // pred_check
      _
    $region74: #{tpu_custom_call.1} parent=1 // pred_check_branch
      %1165 = sbr.rel (0) target = $region76
    $region75: #{tpu_custom_call.1} parent=1 // pred_region
      %1166 = dma.done [#allocation6], 2048
    $region76: #{tpu_custom_call.1} parent=1 // pred_fallthru
      _
    %1167 = vsyncpa [#allocation5], 1
    %1168 = vsyncpa [#allocation6], 1

</llo_original>
